<compile_context>
chip_gen: v6e
topology: v6e:2x2x1
jax: 0.10.0
libtpu: 0.0.40
codegen_flags: <defaults>
</compile_context>

<pallas_src>
import jax
import jax.numpy as jnp
from jax.experimental import pallas as pl
from jax.experimental.pallas import tpu as pltpu

HIDDEN = 32          # args.hidden_size
RECURRENT_N = 1      # args.recurrent_N
LN_EPS = 1e-5        # nn.LayerNorm default eps

GATE_PAD = 128               # each GRU gate padded to a full 128-lane tile
GRU_W = 3 * GATE_PAD         # 384
OUT_LANES = 128              # combined lane-dense output slab width

# Row layout of the packed small-parameter buffer (shape (N_VEC_ROWS, >=384)).
ROW_FN_G, ROW_FN_B = 0, 1
ROW_B1, ROW_G1, ROW_BE1 = 2, 3, 4
ROW_B2, ROW_G2, ROW_BE2 = 5, 6, 7
ROW_BIH, ROW_BHH = 8, 9
ROW_G3, ROW_BE3 = 10, 11
ROW_WQ, ROW_BQ = 12, 13
N_VEC_ROWS = 16


def _round_up(x, m):
    return (x + m - 1) // m * m


def _layernorm(x, gamma, beta):
    # PyTorch LayerNorm: biased variance over the last dim.
    mu = jnp.mean(x, axis=-1, keepdims=True)
    var = jnp.mean(jnp.square(x - mu), axis=-1, keepdims=True)
    return (x - mu) * jax.lax.rsqrt(var + LN_EPS) * gamma + beta


def r_q_critic_kernel(x_ref, h_ref, mask_ref, vec_ref,
                      w1_ref, w2_ref, wih_ref, whh_ref, out_ref):
    H = HIDDEN
    GP = GATE_PAD
    d_in = x_ref.shape[-1]
    tb = x_ref.shape[0]

    x = x_ref[...]                                   # (TB, d_in)

    # --- MLPBase.feature_norm ---
    x = _layernorm(x, vec_ref[ROW_FN_G:ROW_FN_G + 1, :d_in],
                   vec_ref[ROW_FN_B:ROW_FN_B + 1, :d_in])

    # --- MLPLayer.fc1: Linear -> ReLU -> LayerNorm ---
    x = jnp.dot(x, w1_ref[...], preferred_element_type=jnp.float32) \
        + vec_ref[ROW_B1:ROW_B1 + 1, :H]
    x = jnp.maximum(x, 0.0)
    x = _layernorm(x, vec_ref[ROW_G1:ROW_G1 + 1, :H], vec_ref[ROW_BE1:ROW_BE1 + 1, :H])

    # --- MLPLayer.fc2[0] (layer_N = 1): Linear -> ReLU -> LayerNorm ---
    x = jnp.dot(x, w2_ref[...], preferred_element_type=jnp.float32) \
        + vec_ref[ROW_B2:ROW_B2 + 1, :H]
    x = jnp.maximum(x, 0.0)
    x = _layernorm(x, vec_ref[ROW_G2:ROW_G2 + 1, :H], vec_ref[ROW_BE2:ROW_BE2 + 1, :H])

    # --- RNNLayer: masked single-step GRU cell (gates lane-padded to 128) ---
    h = h_ref[...] * mask_ref[...]                   # (TB,H) * (TB,1) broadcast
    gi = jnp.dot(x, wih_ref[...], preferred_element_type=jnp.float32) \
        + vec_ref[ROW_BIH:ROW_BIH + 1, :GRU_W]       # (TB, 384)
    gh = jnp.dot(h, whh_ref[...], preferred_element_type=jnp.float32) \
        + vec_ref[ROW_BHH:ROW_BHH + 1, :GRU_W]       # (TB, 384)

    r = jax.nn.sigmoid(gi[:, 0:GP] + gh[:, 0:GP])                    # 128-aligned slices
    z = jax.nn.sigmoid(gi[:, GP:2 * GP] + gh[:, GP:2 * GP])
    n = jnp.tanh(gi[:, 2 * GP:3 * GP] + r * gh[:, 2 * GP:3 * GP])

    z32 = z[:, :H]
    n32 = n[:, :H]
    h_new = (1.0 - z32) * n32 + z32 * h              # (TB, H), pre-norm rnn_states

    # --- combined lane-dense output slab: lanes [0:H)=h_new, lanes [H:)=value ---
    out_ref[:, :H] = h_new

    feat = _layernorm(h_new, vec_ref[ROW_G3:ROW_G3 + 1, :H],
                      vec_ref[ROW_BE3:ROW_BE3 + 1, :H])
    wq_row = vec_ref[ROW_WQ:ROW_WQ + 1, :H]          # q_out weight as a row vector
    vals = jnp.sum(feat * wq_row, axis=-1, keepdims=True)            # (TB, 1)
    out_ref[:, H:OUT_LANES] = (
        jnp.broadcast_to(vals, (tb, OUT_LANES - H))
        + vec_ref[ROW_BQ:ROW_BQ + 1, :OUT_LANES - H])                # + q_out bias


def init_params(key, obs_dim, act_dim):
    """Deterministic synthetic parameters (shapes match the PyTorch module).
    Linear / GRU weights are stored pre-transposed to [in_features, out_features]."""
    d_in = obs_dim + act_dim
    H = HIDDEN
    ks = jax.random.split(key, 6)

    def w(k, i, o, scale=0.1):
        return scale * jax.random.normal(k, (i, o), jnp.float32)

    return {
        # MLPBase.feature_norm
        "fn_g": jnp.ones((1, d_in), jnp.float32),
        "fn_b": jnp.zeros((1, d_in), jnp.float32),
        # MLPLayer.fc1
        "w1": w(ks[0], d_in, H), "b1": jnp.zeros((1, H), jnp.float32),
        "g1": jnp.ones((1, H), jnp.float32), "be1": jnp.zeros((1, H), jnp.float32),
        # MLPLayer.fc2[0]
        "w2": w(ks[1], H, H), "b2": jnp.zeros((1, H), jnp.float32),
        "g2": jnp.ones((1, H), jnp.float32), "be2": jnp.zeros((1, H), jnp.float32),
        # GRU (gate order r, z, n), already transposed to [in, 3H]
        "w_ih": w(ks[2], H, 3 * H), "b_ih": 0.01 * jnp.ones((1, 3 * H), jnp.float32),
        "w_hh": w(ks[3], H, 3 * H), "b_hh": 0.01 * jnp.ones((1, 3 * H), jnp.float32),
        # RNNLayer.norm
        "g3": jnp.ones((1, H), jnp.float32), "be3": jnp.zeros((1, H), jnp.float32),
        # q_out
        "wq": w(ks[4], H, 1), "bq": jnp.zeros((1, 1), jnp.float32),
    }


def pack_params(params):
    """Pack the small vectors into one buffer; lane-pad GRU gate weights/biases."""
    H = HIDDEN
    GP = GATE_PAD
    d_in = params["w1"].shape[0]
    w_pack = max(GRU_W, _round_up(d_in, 128))

    vecs = jnp.zeros((N_VEC_ROWS, w_pack), jnp.float32)

    def setrow(v, row, data):
        data = jnp.asarray(data, jnp.float32).reshape(-1)
        return v.at[row, :data.shape[0]].set(data)

    vecs = setrow(vecs, ROW_FN_G, params["fn_g"])
    vecs = setrow(vecs, ROW_FN_B, params["fn_b"])
    vecs = setrow(vecs, ROW_B1, params["b1"])
    vecs = setrow(vecs, ROW_G1, params["g1"])
    vecs = setrow(vecs, ROW_BE1, params["be1"])
    vecs = setrow(vecs, ROW_B2, params["b2"])
    vecs = setrow(vecs, ROW_G2, params["g2"])
    vecs = setrow(vecs, ROW_BE2, params["be2"])
    vecs = setrow(vecs, ROW_G3, params["g3"])
    vecs = setrow(vecs, ROW_BE3, params["be3"])
    vecs = setrow(vecs, ROW_WQ, params["wq"])
    # q_out bias broadcast across the whole row (kernel adds a (1, OUT_LANES-H) slice).
    vecs = vecs.at[ROW_BQ, :].set(jnp.asarray(params["bq"], jnp.float32).reshape(())[None])

    b_ih = jnp.asarray(params["b_ih"], jnp.float32).reshape(-1)
    b_hh = jnp.asarray(params["b_hh"], jnp.float32).reshape(-1)
    w_ih = jnp.asarray(params["w_ih"], jnp.float32)
    w_hh = jnp.asarray(params["w_hh"], jnp.float32)
    wih_pad = jnp.zeros((H, GRU_W), jnp.float32)
    whh_pad = jnp.zeros((H, GRU_W), jnp.float32)
    for g in range(3):
        src = slice(g * H, (g + 1) * H)
        dst = slice(g * GP, g * GP + H)
        vecs = vecs.at[ROW_BIH, dst].set(b_ih[src])
        vecs = vecs.at[ROW_BHH, dst].set(b_hh[src])
        wih_pad = wih_pad.at[:, dst].set(w_ih[:, src])
        whh_pad = whh_pad.at[:, dst].set(w_hh[:, src])

    return (vecs,
            jnp.asarray(params["w1"], jnp.float32),
            jnp.asarray(params["w2"], jnp.float32),
            wih_pad, whh_pad)


def r_q_critic_forward(params, cent_obs, rnn_states, masks, act, *, block_b=512):
    H = HIDDEN
    # use_ob=True and Box action space -> concat observations with actions (plain JAX glue).
    x = jnp.concatenate([cent_obs, act], axis=-1).astype(jnp.float32)
    B, d_in = x.shape
    h0 = rnn_states.reshape(B, H).astype(jnp.float32)       # recurrent_N == 1
    m = masks.astype(jnp.float32).reshape(B, 1)

    vecs, w1, w2, wih_pad, whh_pad = pack_params(params)

    tb = _round_up(min(block_b, _round_up(B, 8)), 8)
    b_pad = _round_up(B, tb)
    if b_pad != B:
        pad = b_pad - B
        x = jnp.pad(x, ((0, pad), (0, 0)))
        h0 = jnp.pad(h0, ((0, pad), (0, 0)))
        m = jnp.pad(m, ((0, pad), (0, 0)))

    grid = (b_pad // tb,)

    def batch_spec(feat):
        return pl.BlockSpec((tb, feat), lambda i: (i, 0))

    def const_spec(shape):
        return pl.BlockSpec(shape, lambda i: (0, 0))

    out_slab = pl.pallas_call(
        r_q_critic_kernel,
        out_shape=jax.ShapeDtypeStruct((b_pad, OUT_LANES), jnp.float32),
        grid=grid,
        in_specs=[
            batch_spec(d_in),            # x = [cent_obs, act]
            batch_spec(H),               # h
            batch_spec(1),               # mask
            const_spec(vecs.shape),      # packed gamma/beta/bias/q-weight rows
            const_spec(w1.shape),
            const_spec(w2.shape),
            const_spec(wih_pad.shape),
            const_spec(whh_pad.shape),
        ],
        out_specs=pl.BlockSpec((tb, OUT_LANES), lambda i: (i, 0)),
        compiler_params=pltpu.CompilerParams(
            dimension_semantics=("parallel",)),   # shards batch loop across v7x's 2 TCs
    )(x, h0, m, vecs, w1, w2, wih_pad, whh_pad)

    values = out_slab[:B, H:H + 1]
    h_new = out_slab[:B, :H]
    return values, h_new.reshape(B, RECURRENT_N, H)


def r_q_critic_reference(params, cent_obs, rnn_states, masks, act):
    """Pure-JAX reference mirroring the PyTorch module (for correctness check)."""
    H = HIDDEN

    def ln(v, g, b):
        mu = v.mean(-1, keepdims=True)
        var = ((v - mu) ** 2).mean(-1, keepdims=True)
        return (v - mu) * jax.lax.rsqrt(var + LN_EPS) * g + b

    x = jnp.concatenate([cent_obs, act], axis=-1).astype(jnp.float32)
    x = ln(x, params["fn_g"], params["fn_b"])
    x = ln(jnp.maximum(x @ params["w1"] + params["b1"], 0.0), params["g1"], params["be1"])
    x = ln(jnp.maximum(x @ params["w2"] + params["b2"], 0.0), params["g2"], params["be2"])
    B = x.shape[0]
    h = rnn_states.reshape(B, H) * masks
    gi = x @ params["w_ih"] + params["b_ih"]
    gh = h @ params["w_hh"] + params["b_hh"]
    r = jax.nn.sigmoid(gi[:, :H] + gh[:, :H])
    z = jax.nn.sigmoid(gi[:, H:2 * H] + gh[:, H:2 * H])
    n = jnp.tanh(gi[:, 2 * H:] + r * gh[:, 2 * H:])
    h_new = (1.0 - z) * n + z * h
    feat = ln(h_new, params["g3"], params["be3"])
    vals = feat @ params["wq"] + params["bq"]
    return vals, h_new.reshape(B, RECURRENT_N, H)


if __name__ == "__main__":
    B, OBS_DIM, ACT_DIM = 64, 12, 4

    key = jax.random.PRNGKey(0)
    k_obs, k_act, k_h, k_param = jax.random.split(key, 4)

    cent_obs = jax.random.normal(k_obs, (B, OBS_DIM), jnp.float32)
    act = jax.random.normal(k_act, (B, ACT_DIM), jnp.float32)
    rnn_states = jax.random.normal(k_h, (B, RECURRENT_N, HIDDEN), jnp.float32)
    masks = jnp.ones((B, 1), jnp.float32).at[0, 0].set(0.0)   # one episode reset

    params = init_params(k_param, OBS_DIM, ACT_DIM)

    # block_b=32 -> 2 grid steps, exercises the batch-tiled pipeline at small B.
    values, new_rnn_states = r_q_critic_forward(
        params, cent_obs, rnn_states, masks, act, block_b=32)
    jax.block_until_ready((values, new_rnn_states))

    assert values.shape == (B, 1)
    assert new_rnn_states.shape == (B, RECURRENT_N, HIDDEN)

    ref_values, ref_states = r_q_critic_reference(params, cent_obs, rnn_states, masks, act)
    assert jnp.allclose(values, ref_values, atol=5e-3, rtol=5e-3)
    assert jnp.allclose(new_rnn_states, ref_states, atol=5e-3, rtol=5e-3)

    print("KERNEL_OK")
</pallas_src>

<mosaic_0001>
module attributes {stable_mosaic.version = 11 : i64} {
  func.func @r_q_critic_kernel(%arg0: i32, %arg1: memref<32x16xf32, #tpu.memory_space<vmem>>, %arg2: memref<32x32xf32, #tpu.memory_space<vmem>>, %arg3: memref<32x1xf32, #tpu.memory_space<vmem>>, %arg4: memref<16x384xf32, #tpu.memory_space<vmem>>, %arg5: memref<16x32xf32, #tpu.memory_space<vmem>>, %arg6: memref<32x32xf32, #tpu.memory_space<vmem>>, %arg7: memref<32x384xf32, #tpu.memory_space<vmem>>, %arg8: memref<32x384xf32, #tpu.memory_space<vmem>>, %arg9: memref<32x128xf32, #tpu.memory_space<vmem>>) attributes {dimension_semantics = [#tpu.dimension_semantics<parallel>], iteration_bounds = array<i64: 2>, scalar_prefetch = 0 : i64, scratch_operands = 0 : i64, tpu.core_type = #tpu.core_type<tc>, window_params = [{transform_indices = @transform_0, window_bounds = array<i64: 32, 16>}, {transform_indices = @transform_1, window_bounds = array<i64: 32, 32>}, {transform_indices = @transform_2, window_bounds = array<i64: 32, 1>}, {pipeline_mode = #tpu.pipeline_mode<synchronous>, transform_indices = @transform_3, window_bounds = array<i64: 16, 384>}, {pipeline_mode = #tpu.pipeline_mode<synchronous>, transform_indices = @transform_4, window_bounds = array<i64: 16, 32>}, {pipeline_mode = #tpu.pipeline_mode<synchronous>, transform_indices = @transform_5, window_bounds = array<i64: 32, 32>}, {pipeline_mode = #tpu.pipeline_mode<synchronous>, transform_indices = @transform_6, window_bounds = array<i64: 32, 384>}, {pipeline_mode = #tpu.pipeline_mode<synchronous>, transform_indices = @transform_7, window_bounds = array<i64: 32, 384>}, {transform_indices = @transform_8, window_bounds = array<i64: 32, 128>}]} {
    %c0 = arith.constant 0 : index
    %c0_0 = arith.constant 0 : index
    %0 = vector.load %arg1[%c0, %c0_0] : memref<32x16xf32, #tpu.memory_space<vmem>>, vector<32x16xf32>
    %c0_1 = arith.constant 0 : index
    %c0_2 = arith.constant 0 : index
    %1 = vector.load %arg4[%c0_1, %c0_2] : memref<16x384xf32, #tpu.memory_space<vmem>>, vector<1x16xf32>
    %c1 = arith.constant 1 : index
    %c0_3 = arith.constant 0 : index
    %2 = vector.load %arg4[%c1, %c0_3] : memref<16x384xf32, #tpu.memory_space<vmem>>, vector<1x16xf32>
    %cst = arith.constant dense<0.000000e+00> : vector<32xf32>
    %3 = vector.multi_reduction <add>, %0, %cst [1] : vector<32x16xf32> to vector<32xf32>
    %4 = vector.shape_cast %3 : vector<32xf32> to vector<32x1xf32>
    %cst_4 = arith.constant 1.600000e+01 : f32
    %5 = vector.broadcast %cst_4 : f32 to vector<32x1xf32>
    %6 = arith.divf %4, %5 : vector<32x1xf32>
    %7 = vector.broadcast %6 : vector<32x1xf32> to vector<32x16xf32>
    %8 = arith.subf %0, %7 : vector<32x16xf32>
    %9 = arith.mulf %8, %8 : vector<32x16xf32>
    %cst_5 = arith.constant dense<0.000000e+00> : vector<32xf32>
    %10 = vector.multi_reduction <add>, %9, %cst_5 [1] : vector<32x16xf32> to vector<32xf32>
    %11 = vector.shape_cast %10 : vector<32xf32> to vector<32x1xf32>
    %cst_6 = arith.constant 1.600000e+01 : f32
    %12 = vector.broadcast %cst_6 : f32 to vector<32x1xf32>
    %13 = arith.divf %11, %12 : vector<32x1xf32>
    %14 = vector.broadcast %6 : vector<32x1xf32> to vector<32x16xf32>
    %15 = arith.subf %0, %14 : vector<32x16xf32>
    %cst_7 = arith.constant 9.99999974E-6 : f32
    %16 = vector.broadcast %cst_7 : f32 to vector<32x1xf32>
    %17 = arith.addf %13, %16 : vector<32x1xf32>
    %18 = math.rsqrt %17 : vector<32x1xf32>
    %19 = vector.broadcast %18 : vector<32x1xf32> to vector<32x16xf32>
    %20 = arith.mulf %15, %19 : vector<32x16xf32>
    %21 = vector.broadcast %1 : vector<1x16xf32> to vector<32x16xf32>
    %22 = arith.mulf %20, %21 : vector<32x16xf32>
    %23 = vector.broadcast %2 : vector<1x16xf32> to vector<32x16xf32>
    %24 = arith.addf %22, %23 : vector<32x16xf32>
    %c0_8 = arith.constant 0 : index
    %c0_9 = arith.constant 0 : index
    %25 = vector.load %arg5[%c0_8, %c0_9] : memref<16x32xf32, #tpu.memory_space<vmem>>, vector<16x32xf32>
    %cst_10 = arith.constant dense<0.000000e+00> : vector<32x32xf32>
    %26 = tpu.matmul %24, %25, %cst_10 {dimension_numbers = #tpu.dot_dimension_numbers<[1], [0], [0], [1], [0, 0, 1, 1], [], []>} : vector<32x16xf32>, vector<16x32xf32>, vector<32x32xf32> -> vector<32x32xf32>
    %c2 = arith.constant 2 : index
    %c0_11 = arith.constant 0 : index
    %27 = vector.load %arg4[%c2, %c0_11] : memref<16x384xf32, #tpu.memory_space<vmem>>, vector<1x32xf32>
    %28 = vector.broadcast %27 : vector<1x32xf32> to vector<32x32xf32>
    %29 = arith.addf %26, %28 : vector<32x32xf32>
    %cst_12 = arith.constant 0.000000e+00 : f32
    %30 = vector.broadcast %cst_12 : f32 to vector<32x32xf32>
    %31 = arith.maximumf %29, %30 : vector<32x32xf32>
    %c3 = arith.constant 3 : index
    %c0_13 = arith.constant 0 : index
    %32 = vector.load %arg4[%c3, %c0_13] : memref<16x384xf32, #tpu.memory_space<vmem>>, vector<1x32xf32>
    %c4 = arith.constant 4 : index
    %c0_14 = arith.constant 0 : index
    %33 = vector.load %arg4[%c4, %c0_14] : memref<16x384xf32, #tpu.memory_space<vmem>>, vector<1x32xf32>
    %cst_15 = arith.constant dense<0.000000e+00> : vector<32xf32>
    %34 = vector.multi_reduction <add>, %31, %cst_15 [1] : vector<32x32xf32> to vector<32xf32>
    %35 = vector.shape_cast %34 : vector<32xf32> to vector<32x1xf32>
    %cst_16 = arith.constant 3.200000e+01 : f32
    %36 = vector.broadcast %cst_16 : f32 to vector<32x1xf32>
    %37 = arith.divf %35, %36 : vector<32x1xf32>
    %38 = vector.broadcast %37 : vector<32x1xf32> to vector<32x32xf32>
    %39 = arith.subf %31, %38 : vector<32x32xf32>
    %40 = arith.mulf %39, %39 : vector<32x32xf32>
    %cst_17 = arith.constant dense<0.000000e+00> : vector<32xf32>
    %41 = vector.multi_reduction <add>, %40, %cst_17 [1] : vector<32x32xf32> to vector<32xf32>
    %42 = vector.shape_cast %41 : vector<32xf32> to vector<32x1xf32>
    %cst_18 = arith.constant 3.200000e+01 : f32
    %43 = vector.broadcast %cst_18 : f32 to vector<32x1xf32>
    %44 = arith.divf %42, %43 : vector<32x1xf32>
    %45 = vector.broadcast %37 : vector<32x1xf32> to vector<32x32xf32>
    %46 = arith.subf %31, %45 : vector<32x32xf32>
    %cst_19 = arith.constant 9.99999974E-6 : f32
    %47 = vector.broadcast %cst_19 : f32 to vector<32x1xf32>
    %48 = arith.addf %44, %47 : vector<32x1xf32>
    %49 = math.rsqrt %48 : vector<32x1xf32>
    %50 = vector.broadcast %49 : vector<32x1xf32> to vector<32x32xf32>
    %51 = arith.mulf %46, %50 : vector<32x32xf32>
    %52 = vector.broadcast %32 : vector<1x32xf32> to vector<32x32xf32>
    %53 = arith.mulf %51, %52 : vector<32x32xf32>
    %54 = vector.broadcast %33 : vector<1x32xf32> to vector<32x32xf32>
    %55 = arith.addf %53, %54 : vector<32x32xf32>
    %c0_20 = arith.constant 0 : index
    %c0_21 = arith.constant 0 : index
    %56 = vector.load %arg6[%c0_20, %c0_21] : memref<32x32xf32, #tpu.memory_space<vmem>>, vector<32x32xf32>
    %cst_22 = arith.constant dense<0.000000e+00> : vector<32x32xf32>
    %57 = tpu.matmul %55, %56, %cst_22 {dimension_numbers = #tpu.dot_dimension_numbers<[1], [0], [0], [1], [0, 0, 1, 1], [], []>} : vector<32x32xf32>, vector<32x32xf32>, vector<32x32xf32> -> vector<32x32xf32>
    %c5 = arith.constant 5 : index
    %c0_23 = arith.constant 0 : index
    %58 = vector.load %arg4[%c5, %c0_23] : memref<16x384xf32, #tpu.memory_space<vmem>>, vector<1x32xf32>
    %59 = vector.broadcast %58 : vector<1x32xf32> to vector<32x32xf32>
    %60 = arith.addf %57, %59 : vector<32x32xf32>
    %cst_24 = arith.constant 0.000000e+00 : f32
    %61 = vector.broadcast %cst_24 : f32 to vector<32x32xf32>
    %62 = arith.maximumf %60, %61 : vector<32x32xf32>
    %c6 = arith.constant 6 : index
    %c0_25 = arith.constant 0 : index
    %63 = vector.load %arg4[%c6, %c0_25] : memref<16x384xf32, #tpu.memory_space<vmem>>, vector<1x32xf32>
    %c7 = arith.constant 7 : index
    %c0_26 = arith.constant 0 : index
    %64 = vector.load %arg4[%c7, %c0_26] : memref<16x384xf32, #tpu.memory_space<vmem>>, vector<1x32xf32>
    %cst_27 = arith.constant dense<0.000000e+00> : vector<32xf32>
    %65 = vector.multi_reduction <add>, %62, %cst_27 [1] : vector<32x32xf32> to vector<32xf32>
    %66 = vector.shape_cast %65 : vector<32xf32> to vector<32x1xf32>
    %cst_28 = arith.constant 3.200000e+01 : f32
    %67 = vector.broadcast %cst_28 : f32 to vector<32x1xf32>
    %68 = arith.divf %66, %67 : vector<32x1xf32>
    %69 = vector.broadcast %68 : vector<32x1xf32> to vector<32x32xf32>
    %70 = arith.subf %62, %69 : vector<32x32xf32>
    %71 = arith.mulf %70, %70 : vector<32x32xf32>
    %cst_29 = arith.constant dense<0.000000e+00> : vector<32xf32>
    %72 = vector.multi_reduction <add>, %71, %cst_29 [1] : vector<32x32xf32> to vector<32xf32>
    %73 = vector.shape_cast %72 : vector<32xf32> to vector<32x1xf32>
    %cst_30 = arith.constant 3.200000e+01 : f32
    %74 = vector.broadcast %cst_30 : f32 to vector<32x1xf32>
    %75 = arith.divf %73, %74 : vector<32x1xf32>
    %76 = vector.broadcast %68 : vector<32x1xf32> to vector<32x32xf32>
    %77 = arith.subf %62, %76 : vector<32x32xf32>
    %cst_31 = arith.constant 9.99999974E-6 : f32
    %78 = vector.broadcast %cst_31 : f32 to vector<32x1xf32>
    %79 = arith.addf %75, %78 : vector<32x1xf32>
    %80 = math.rsqrt %79 : vector<32x1xf32>
    %81 = vector.broadcast %80 : vector<32x1xf32> to vector<32x32xf32>
    %82 = arith.mulf %77, %81 : vector<32x32xf32>
    %83 = vector.broadcast %63 : vector<1x32xf32> to vector<32x32xf32>
    %84 = arith.mulf %82, %83 : vector<32x32xf32>
    %85 = vector.broadcast %64 : vector<1x32xf32> to vector<32x32xf32>
    %86 = arith.addf %84, %85 : vector<32x32xf32>
    %c0_32 = arith.constant 0 : index
    %c0_33 = arith.constant 0 : index
    %87 = vector.load %arg2[%c0_32, %c0_33] : memref<32x32xf32, #tpu.memory_space<vmem>>, vector<32x32xf32>
    %c0_34 = arith.constant 0 : index
    %c0_35 = arith.constant 0 : index
    %88 = vector.load %arg3[%c0_34, %c0_35] : memref<32x1xf32, #tpu.memory_space<vmem>>, vector<32x1xf32>
    %89 = vector.broadcast %88 : vector<32x1xf32> to vector<32x32xf32>
    %90 = arith.mulf %87, %89 : vector<32x32xf32>
    %c0_36 = arith.constant 0 : index
    %c0_37 = arith.constant 0 : index
    %91 = vector.load %arg7[%c0_36, %c0_37] : memref<32x384xf32, #tpu.memory_space<vmem>>, vector<32x384xf32>
    %cst_38 = arith.constant dense<0.000000e+00> : vector<32x384xf32>
    %92 = tpu.matmul %86, %91, %cst_38 {dimension_numbers = #tpu.dot_dimension_numbers<[1], [0], [0], [1], [0, 0, 1, 1], [], []>} : vector<32x32xf32>, vector<32x384xf32>, vector<32x384xf32> -> vector<32x384xf32>
    %c8 = arith.constant 8 : index
    %c0_39 = arith.constant 0 : index
    %93 = vector.load %arg4[%c8, %c0_39] : memref<16x384xf32, #tpu.memory_space<vmem>>, vector<1x384xf32>
    %94 = vector.broadcast %93 : vector<1x384xf32> to vector<32x384xf32>
    %95 = arith.addf %92, %94 : vector<32x384xf32>
    %c0_40 = arith.constant 0 : index
    %c0_41 = arith.constant 0 : index
    %96 = vector.load %arg8[%c0_40, %c0_41] : memref<32x384xf32, #tpu.memory_space<vmem>>, vector<32x384xf32>
    %cst_42 = arith.constant dense<0.000000e+00> : vector<32x384xf32>
    %97 = tpu.matmul %90, %96, %cst_42 {dimension_numbers = #tpu.dot_dimension_numbers<[1], [0], [0], [1], [0, 0, 1, 1], [], []>} : vector<32x32xf32>, vector<32x384xf32>, vector<32x384xf32> -> vector<32x384xf32>
    %c9 = arith.constant 9 : index
    %c0_43 = arith.constant 0 : index
    %98 = vector.load %arg4[%c9, %c0_43] : memref<16x384xf32, #tpu.memory_space<vmem>>, vector<1x384xf32>
    %99 = vector.broadcast %98 : vector<1x384xf32> to vector<32x384xf32>
    %100 = arith.addf %97, %99 : vector<32x384xf32>
    %101 = vector.extract_strided_slice %95 {offsets = [0, 0], sizes = [32, 128], strides = [1, 1]} : vector<32x384xf32> to vector<32x128xf32>
    %102 = vector.extract_strided_slice %100 {offsets = [0, 0], sizes = [32, 128], strides = [1, 1]} : vector<32x384xf32> to vector<32x128xf32>
    %103 = arith.addf %101, %102 : vector<32x128xf32>
    %104 = arith.negf %103 : vector<32x128xf32>
    %105 = math.exp %104 : vector<32x128xf32>
    %cst_44 = arith.constant 1.000000e+00 : f32
    %106 = vector.broadcast %cst_44 : f32 to vector<32x128xf32>
    %107 = arith.addf %106, %105 : vector<32x128xf32>
    %108 = arith.divf %106, %107 : vector<32x128xf32>
    %109 = vector.extract_strided_slice %95 {offsets = [0, 128], sizes = [32, 128], strides = [1, 1]} : vector<32x384xf32> to vector<32x128xf32>
    %110 = vector.extract_strided_slice %100 {offsets = [0, 128], sizes = [32, 128], strides = [1, 1]} : vector<32x384xf32> to vector<32x128xf32>
    %111 = arith.addf %109, %110 : vector<32x128xf32>
    %112 = arith.negf %111 : vector<32x128xf32>
    %113 = math.exp %112 : vector<32x128xf32>
    %cst_45 = arith.constant 1.000000e+00 : f32
    %114 = vector.broadcast %cst_45 : f32 to vector<32x128xf32>
    %115 = arith.addf %114, %113 : vector<32x128xf32>
    %116 = arith.divf %114, %115 : vector<32x128xf32>
    %117 = vector.extract_strided_slice %95 {offsets = [0, 256], sizes = [32, 128], strides = [1, 1]} : vector<32x384xf32> to vector<32x128xf32>
    %118 = vector.extract_strided_slice %100 {offsets = [0, 256], sizes = [32, 128], strides = [1, 1]} : vector<32x384xf32> to vector<32x128xf32>
    %119 = arith.mulf %108, %118 : vector<32x128xf32>
    %120 = arith.addf %117, %119 : vector<32x128xf32>
    %121 = math.tanh %120 : vector<32x128xf32>
    %122 = vector.extract_strided_slice %116 {offsets = [0, 0], sizes = [32, 32], strides = [1, 1]} : vector<32x128xf32> to vector<32x32xf32>
    %123 = vector.extract_strided_slice %121 {offsets = [0, 0], sizes = [32, 32], strides = [1, 1]} : vector<32x128xf32> to vector<32x32xf32>
    %cst_46 = arith.constant 1.000000e+00 : f32
    %124 = vector.broadcast %cst_46 : f32 to vector<32x32xf32>
    %125 = arith.subf %124, %122 : vector<32x32xf32>
    %126 = arith.mulf %125, %123 : vector<32x32xf32>
    %127 = arith.mulf %122, %90 : vector<32x32xf32>
    %128 = arith.addf %126, %127 : vector<32x32xf32>
    %c0_47 = arith.constant 0 : index
    %c0_48 = arith.constant 0 : index
    %129 = vector.load %arg9[%c0_47, %c0_48] : memref<32x128xf32, #tpu.memory_space<vmem>>, vector<32x32xf32>
    tpu.vector_store %arg9[%c0_47, %c0_48], %128 {strides = array<i32>} : memref<32x128xf32, #tpu.memory_space<vmem>>, vector<32x32xf32>,
    %c10 = arith.constant 10 : index
    %c0_49 = arith.constant 0 : index
    %130 = vector.load %arg4[%c10, %c0_49] : memref<16x384xf32, #tpu.memory_space<vmem>>, vector<1x32xf32>
    %c11 = arith.constant 11 : index
    %c0_50 = arith.constant 0 : index
    %131 = vector.load %arg4[%c11, %c0_50] : memref<16x384xf32, #tpu.memory_space<vmem>>, vector<1x32xf32>
    %cst_51 = arith.constant dense<0.000000e+00> : vector<32xf32>
    %132 = vector.multi_reduction <add>, %128, %cst_51 [1] : vector<32x32xf32> to vector<32xf32>
    %133 = vector.shape_cast %132 : vector<32xf32> to vector<32x1xf32>
    %cst_52 = arith.constant 3.200000e+01 : f32
    %134 = vector.broadcast %cst_52 : f32 to vector<32x1xf32>
    %135 = arith.divf %133, %134 : vector<32x1xf32>
    %136 = vector.broadcast %135 : vector<32x1xf32> to vector<32x32xf32>
    %137 = arith.subf %128, %136 : vector<32x32xf32>
    %138 = arith.mulf %137, %137 : vector<32x32xf32>
    %cst_53 = arith.constant dense<0.000000e+00> : vector<32xf32>
    %139 = vector.multi_reduction <add>, %138, %cst_53 [1] : vector<32x32xf32> to vector<32xf32>
    %140 = vector.shape_cast %139 : vector<32xf32> to vector<32x1xf32>
    %cst_54 = arith.constant 3.200000e+01 : f32
    %141 = vector.broadcast %cst_54 : f32 to vector<32x1xf32>
    %142 = arith.divf %140, %141 : vector<32x1xf32>
    %143 = vector.broadcast %135 : vector<32x1xf32> to vector<32x32xf32>
    %144 = arith.subf %128, %143 : vector<32x32xf32>
    %cst_55 = arith.constant 9.99999974E-6 : f32
    %145 = vector.broadcast %cst_55 : f32 to vector<32x1xf32>
    %146 = arith.addf %142, %145 : vector<32x1xf32>
    %147 = math.rsqrt %146 : vector<32x1xf32>
    %148 = vector.broadcast %147 : vector<32x1xf32> to vector<32x32xf32>
    %149 = arith.mulf %144, %148 : vector<32x32xf32>
    %150 = vector.broadcast %130 : vector<1x32xf32> to vector<32x32xf32>
    %151 = arith.mulf %149, %150 : vector<32x32xf32>
    %152 = vector.broadcast %131 : vector<1x32xf32> to vector<32x32xf32>
    %153 = arith.addf %151, %152 : vector<32x32xf32>
    %c12 = arith.constant 12 : index
    %c0_56 = arith.constant 0 : index
    %154 = vector.load %arg4[%c12, %c0_56] : memref<16x384xf32, #tpu.memory_space<vmem>>, vector<1x32xf32>
    %155 = vector.broadcast %154 : vector<1x32xf32> to vector<32x32xf32>
    %156 = arith.mulf %153, %155 : vector<32x32xf32>
    %cst_57 = arith.constant dense<0.000000e+00> : vector<32xf32>
    %157 = vector.multi_reduction <add>, %156, %cst_57 [1] : vector<32x32xf32> to vector<32xf32>
    %158 = vector.shape_cast %157 : vector<32xf32> to vector<32x1xf32>
    %159 = vector.shape_cast %158 : vector<32x1xf32> to vector<32x1xf32>
    %160 = vector.broadcast %159 : vector<32x1xf32> to vector<32x96xf32>
    %c13 = arith.constant 13 : index
    %c0_58 = arith.constant 0 : index
    %161 = vector.load %arg4[%c13, %c0_58] : memref<16x384xf32, #tpu.memory_space<vmem>>, vector<1x96xf32>
    %162 = vector.broadcast %161 : vector<1x96xf32> to vector<32x96xf32>
    %163 = arith.addf %160, %162 : vector<32x96xf32>
    %c0_59 = arith.constant 0 : index
    %c32 = arith.constant 32 : index
    %164 = vector.load %arg9[%c0_59, %c32] : memref<32x128xf32, #tpu.memory_space<vmem>>, vector<32x96xf32>
    tpu.vector_store %arg9[%c0_59, %c32], %163 {strides = array<i32>} : memref<32x128xf32, #tpu.memory_space<vmem>>, vector<32x96xf32>,
    return
  }
  func.func @transform_0(%arg0: i32) -> (i32, i32) {
    %c0_i32 = arith.constant 0 : i32
    %c0_i32_0 = arith.constant 0 : i32
    return %arg0, %c0_i32 : i32, i32
  }
  func.func @transform_1(%arg0: i32) -> (i32, i32) {
    %c0_i32 = arith.constant 0 : i32
    %c0_i32_0 = arith.constant 0 : i32
    return %arg0, %c0_i32 : i32, i32
  }
  func.func @transform_2(%arg0: i32) -> (i32, i32) {
    %c0_i32 = arith.constant 0 : i32
    %c0_i32_0 = arith.constant 0 : i32
    return %arg0, %c0_i32 : i32, i32
  }
  func.func @transform_3(%arg0: i32) -> (i32, i32) {
    %c0_i32 = arith.constant 0 : i32
    %c0_i32_0 = arith.constant 0 : i32
    %c0_i32_1 = arith.constant 0 : i32
    return %c0_i32, %c0_i32_0 : i32, i32
  }
  func.func @transform_4(%arg0: i32) -> (i32, i32) {
    %c0_i32 = arith.constant 0 : i32
    %c0_i32_0 = arith.constant 0 : i32
    %c0_i32_1 = arith.constant 0 : i32
    return %c0_i32, %c0_i32_0 : i32, i32
  }
  func.func @transform_5(%arg0: i32) -> (i32, i32) {
    %c0_i32 = arith.constant 0 : i32
    %c0_i32_0 = arith.constant 0 : i32
    %c0_i32_1 = arith.constant 0 : i32
    return %c0_i32, %c0_i32_0 : i32, i32
  }
  func.func @transform_6(%arg0: i32) -> (i32, i32) {
    %c0_i32 = arith.constant 0 : i32
    %c0_i32_0 = arith.constant 0 : i32
    %c0_i32_1 = arith.constant 0 : i32
    return %c0_i32, %c0_i32_0 : i32, i32
  }
  func.func @transform_7(%arg0: i32) -> (i32, i32) {
    %c0_i32 = arith.constant 0 : i32
    %c0_i32_0 = arith.constant 0 : i32
    %c0_i32_1 = arith.constant 0 : i32
    return %c0_i32, %c0_i32_0 : i32, i32
  }
  func.func @transform_8(%arg0: i32) -> (i32, i32) {
    %c0_i32 = arith.constant 0 : i32
    %c0_i32_0 = arith.constant 0 : i32
    return %arg0, %c0_i32 : i32, i32
  }
}

</mosaic_0001>

<llo_original>
// kernel: tpu_custom_call.1
$region0: #{tpu_custom_call.1}
  #allocation0 [shape = 'u32[]', space=smem, size = 0x4, offset = 0x4, fixed_abs, tag = 'smem constant byte address 0x4 - core index']
  #allocation1 [shape = 'u32[144,128]{1,0:T(1,128)}', space=vmem, size = 0x12000, scoped, tag = 'internal scratch']
  %s0 = inlined_call_operand.vmem [shape: f32[64,16], index: 0, kind: input, shape index: {}]
  %s1 = inlined_call_operand.vmem [shape: f32[64,32], index: 1, kind: input, shape index: {}]
  %s2 = inlined_call_operand.vmem [shape: f32[64,1], index: 2, kind: input, shape index: {}]
  %s3 = inlined_call_operand.vmem [shape: f32[16,384], index: 3, kind: input, shape index: {}]
  %s4 = inlined_call_operand.hbm [shape: f32[16,32], index: 4, kind: input, shape index: {}]
  %s5 = inlined_call_operand.hbm [shape: f32[32,32], index: 5, kind: input, shape index: {}]
  %s6 = inlined_call_operand.vmem [shape: f32[32,384], index: 6, kind: input, shape index: {}]
  %s7 = inlined_call_operand.vmem [shape: f32[32,384], index: 7, kind: input, shape index: {}]
  %s8 = inlined_call_operand.hbm [shape: f32[64,128], index: 8, kind: output, shape index: {}]
  %s9 = sld [smem:[#allocation0]]
  $region73: #{tpu_custom_call.1} parent=0
    _
  %s11 = ssub.s32 1, %s9
  %s12 = scalar_select 0, %s11, %s9
  $region1: #{tpu_custom_call.1} parent=0
    #allocation2 [shape = 'u8[8192]{0}', space=vmem, size = 0x2000, scoped, tag = 'input window, operand 4, single buffered']
    #allocation3 [shape = 's32[2]{0}', space=sflag, size = 0x8, scoped, tag = 'scoped memory for tpu_custom_call.1']
    #allocation4 [shape = 's32[2]{0}', space=sflag, size = 0x8, scoped, tag = 'scoped memory for tpu_custom_call.1']
    #allocation5 [shape = 'u8[16384]{0}', space=vmem, size = 0x4000, scoped, tag = 'input window, operand 5, single buffered']
    #allocation6 [shape = 's32[1]{0}', space=sflag, size = 0x4, scoped, tag = 'scoped memory for tpu_custom_call.1']
    #allocation7 [shape = 'u8[32768]{0}', space=vmem, size = 0x8000, scoped, tag = 'output window, operand 0']
    %13 = vsyncpa [#allocation3], 0
    %14 = vsyncpa [#allocation6], 0
    %15 = vsyncpa [#allocation4], 0
    %s16 = scalar_lea.sflag [#allocation4], 1
    %17 = vsyncpa %s16, 0
    loop: start=0, step=1, limit=4
    $region2: #{tpu_custom_call.1} parent=1 // loop_pre_header
      _
    $region3: #{tpu_custom_call.1} parent=1 // loop_header
      %s19 = sphi 0, %s23
      %p20 = scmp.ge.s32.totalorder %s19, 4
      %s29 = sphi 0, %s31
      %s32 = sphi 0, %s29
      %s33 = sphi 0, %s32
      %s49 = sphi 0, %s33
      %s55 = sphi 0, %s57
      %s58 = sphi 0, %s55
      %s59 = sphi 0, %s58
      %s75 = sphi 0, %s59
      %s81 = sphi 0, %s83
      %s84 = sphi 0, %s81
      %s85 = sphi 0, %s84
      %s101 = sphi 0, %s85
      %s105 = sphi 0, %s105
      %s107 = sphi 0, %s105
      %s108 = sphi 0, %s107
      %s122 = sphi 0, %s108
      %s126 = sphi 0, %s126
      %s128 = sphi 0, %s126
      %s129 = sphi 0, %s128
      %s143 = sphi 0, %s129
      %s147 = sphi 0, %s147
      %s149 = sphi 0, %s147
      %s150 = sphi 0, %s149
      %s164 = sphi 0, %s150
      %s168 = sphi 0, %s168
      %s170 = sphi 0, %s168
      %s171 = sphi 0, %s170
      %s185 = sphi 0, %s171
      %s189 = sphi 0, %s189
      %s191 = sphi 0, %s189
      %s192 = sphi 0, %s191
      %s206 = sphi 0, %s192
      %s212 = sphi 0, %s214
      %s215 = sphi 0, %s212
      %s216 = sphi 0, %s215
      %s232 = sphi 0, %s216
    $region4: #{tpu_custom_call.1} parent=1 // loop_header_branch
      %22 = sbr.rel (%p20) target = $region8
    $region5: #{tpu_custom_call.1} parent=1 // loop_body
      %s24 = ssub.s32 %s19, 1
      %s25 = ssub.s32 %s19, 2
      %s26 = sadd.s32 %s19, 1
      %s27 = ssub.s32 %s19, %s26
      %p28 = scmp.eq.s32.totalorder %s27, 0
      %s30 = sadd.s32 %s29, 1
      %s31 = scalar_select %p28, %s29, %s30
      %p34 = pneg %p28
      %p35 = scmp.eq.s32.totalorder %s19, 1
      %p36 = por %p34, %p35
      %p37 = scmp.ne.s32.totalorder %s29, %s32
      %p38 = scmp.eq.s32.totalorder %s19, 0
      %p39 = por %p37, %p38
      %p40 = scmp.ne.s32.totalorder %s29, %s32
      %p41 = scmp.eq.s32.totalorder %s24, 1
      %p42 = por %p40, %p41
      %p43 = scmp.ne.s32.totalorder %s32, %s33
      %p44 = scmp.eq.s32.totalorder %s24, 0
      %p45 = por %p43, %p44
      %p46 = scmp.ne.s32.totalorder %s32, %s33
      %p47 = scmp.eq.s32.totalorder %s25, 1
      %p48 = por %p46, %p47
      %p50 = scmp.ne.s32.totalorder %s33, %s49
      %p51 = scmp.eq.s32.totalorder %s25, 0
      %p52 = por %p50, %p51
      %s53 = ssub.s32 %s19, %s26
      %p54 = scmp.eq.s32.totalorder %s53, 0
      %s56 = sadd.s32 %s55, 1
      %s57 = scalar_select %p54, %s55, %s56
      %p60 = pneg %p54
      %p61 = scmp.eq.s32.totalorder %s19, 1
      %p62 = por %p60, %p61
      %p63 = scmp.ne.s32.totalorder %s55, %s58
      %p64 = scmp.eq.s32.totalorder %s19, 0
      %p65 = por %p63, %p64
      %p66 = scmp.ne.s32.totalorder %s55, %s58
      %p67 = scmp.eq.s32.totalorder %s24, 1
      %p68 = por %p66, %p67
      %p69 = scmp.ne.s32.totalorder %s58, %s59
      %p70 = scmp.eq.s32.totalorder %s24, 0
      %p71 = por %p69, %p70
      %p72 = scmp.ne.s32.totalorder %s58, %s59
      %p73 = scmp.eq.s32.totalorder %s25, 1
      %p74 = por %p72, %p73
      %p76 = scmp.ne.s32.totalorder %s59, %s75
      %p77 = scmp.eq.s32.totalorder %s25, 0
      %p78 = por %p76, %p77
      %s79 = ssub.s32 %s19, %s26
      %p80 = scmp.eq.s32.totalorder %s79, 0
      %s82 = sadd.s32 %s81, 1
      %s83 = scalar_select %p80, %s81, %s82
      %p86 = pneg %p80
      %p87 = scmp.eq.s32.totalorder %s19, 1
      %p88 = por %p86, %p87
      %p89 = scmp.ne.s32.totalorder %s81, %s84
      %p90 = scmp.eq.s32.totalorder %s19, 0
      %p91 = por %p89, %p90
      %p92 = scmp.ne.s32.totalorder %s81, %s84
      %p93 = scmp.eq.s32.totalorder %s24, 1
      %p94 = por %p92, %p93
      %p95 = scmp.ne.s32.totalorder %s84, %s85
      %p96 = scmp.eq.s32.totalorder %s24, 0
      %p97 = por %p95, %p96
      %p98 = scmp.ne.s32.totalorder %s84, %s85
      %p99 = scmp.eq.s32.totalorder %s25, 1
      %p100 = por %p98, %p99
      %p102 = scmp.ne.s32.totalorder %s85, %s101
      %p103 = scmp.eq.s32.totalorder %s25, 0
      %p104 = por %p102, %p103
      %s106 = sadd.s32 %s105, 1
      %p109 = scmp.eq.s32.totalorder %s19, 1
      %p110 = scmp.ne.s32.totalorder %s105, %s107
      %p111 = scmp.eq.s32.totalorder %s19, 0
      %p112 = por %p110, %p111
      %p113 = scmp.ne.s32.totalorder %s105, %s107
      %p114 = scmp.eq.s32.totalorder %s24, 1
      %p115 = por %p113, %p114
      %p116 = scmp.ne.s32.totalorder %s107, %s108
      %p117 = scmp.eq.s32.totalorder %s24, 0
      %p118 = por %p116, %p117
      %p119 = scmp.ne.s32.totalorder %s107, %s108
      %p120 = scmp.eq.s32.totalorder %s25, 1
      %p121 = por %p119, %p120
      %p123 = scmp.ne.s32.totalorder %s108, %s122
      %p124 = scmp.eq.s32.totalorder %s25, 0
      %p125 = por %p123, %p124
      %s127 = sadd.s32 %s126, 1
      %p130 = scmp.eq.s32.totalorder %s19, 1
      %p131 = scmp.ne.s32.totalorder %s126, %s128
      %p132 = scmp.eq.s32.totalorder %s19, 0
      %p133 = por %p131, %p132
      %p134 = scmp.ne.s32.totalorder %s126, %s128
      %p135 = scmp.eq.s32.totalorder %s24, 1
      %p136 = por %p134, %p135
      %p137 = scmp.ne.s32.totalorder %s128, %s129
      %p138 = scmp.eq.s32.totalorder %s24, 0
      %p139 = por %p137, %p138
      %p140 = scmp.ne.s32.totalorder %s128, %s129
      %p141 = scmp.eq.s32.totalorder %s25, 1
      %p142 = por %p140, %p141
      %p144 = scmp.ne.s32.totalorder %s129, %s143
      %p145 = scmp.eq.s32.totalorder %s25, 0
      %p146 = por %p144, %p145
      %s148 = sadd.s32 %s147, 1
      %p151 = scmp.eq.s32.totalorder %s19, 1
      %p152 = scmp.ne.s32.totalorder %s147, %s149
      %p153 = scmp.eq.s32.totalorder %s19, 0
      %p154 = por %p152, %p153
      %p155 = scmp.ne.s32.totalorder %s147, %s149
      %p156 = scmp.eq.s32.totalorder %s24, 1
      %p157 = por %p155, %p156
      %p158 = scmp.ne.s32.totalorder %s149, %s150
      %p159 = scmp.eq.s32.totalorder %s24, 0
      %p160 = por %p158, %p159
      %p161 = scmp.ne.s32.totalorder %s149, %s150
      %p162 = scmp.eq.s32.totalorder %s25, 1
      %p163 = por %p161, %p162
      %p165 = scmp.ne.s32.totalorder %s150, %s164
      %p166 = scmp.eq.s32.totalorder %s25, 0
      %p167 = por %p165, %p166
      %s169 = sadd.s32 %s168, 1
      %p172 = scmp.eq.s32.totalorder %s19, 1
      %p173 = scmp.ne.s32.totalorder %s168, %s170
      %p174 = scmp.eq.s32.totalorder %s19, 0
      %p175 = por %p173, %p174
      %p176 = scmp.ne.s32.totalorder %s168, %s170
      %p177 = scmp.eq.s32.totalorder %s24, 1
      %p178 = por %p176, %p177
      %p179 = scmp.ne.s32.totalorder %s170, %s171
      %p180 = scmp.eq.s32.totalorder %s24, 0
      %p181 = por %p179, %p180
      %p182 = scmp.ne.s32.totalorder %s170, %s171
      %p183 = scmp.eq.s32.totalorder %s25, 1
      %p184 = por %p182, %p183
      %p186 = scmp.ne.s32.totalorder %s171, %s185
      %p187 = scmp.eq.s32.totalorder %s25, 0
      %p188 = por %p186, %p187
      %s190 = sadd.s32 %s189, 1
      %p193 = scmp.eq.s32.totalorder %s19, 1
      %p194 = scmp.ne.s32.totalorder %s189, %s191
      %p195 = scmp.eq.s32.totalorder %s19, 0
      %p196 = por %p194, %p195
      %p197 = scmp.ne.s32.totalorder %s189, %s191
      %p198 = scmp.eq.s32.totalorder %s24, 1
      %p199 = por %p197, %p198
      %p200 = scmp.ne.s32.totalorder %s191, %s192
      %p201 = scmp.eq.s32.totalorder %s24, 0
      %p202 = por %p200, %p201
      %p203 = scmp.ne.s32.totalorder %s191, %s192
      %p204 = scmp.eq.s32.totalorder %s25, 1
      %p205 = por %p203, %p204
      %p207 = scmp.ne.s32.totalorder %s192, %s206
      %p208 = scmp.eq.s32.totalorder %s25, 0
      %p209 = por %p207, %p208
      %s210 = ssub.s32 %s19, %s26
      %p211 = scmp.eq.s32.totalorder %s210, 0
      %s213 = sadd.s32 %s212, 1
      %s214 = scalar_select %p211, %s212, %s213
      %p217 = pneg %p211
      %p218 = scmp.eq.s32.totalorder %s19, 1
      %p219 = por %p217, %p218
      %p220 = scmp.ne.s32.totalorder %s212, %s215
      %p221 = scmp.eq.s32.totalorder %s19, 0
      %p222 = por %p220, %p221
      %p223 = scmp.ne.s32.totalorder %s212, %s215
      %p224 = scmp.eq.s32.totalorder %s24, 1
      %p225 = por %p223, %p224
      %p226 = scmp.ne.s32.totalorder %s215, %s216
      %p227 = scmp.eq.s32.totalorder %s24, 0
      %p228 = por %p226, %p227
      %p229 = scmp.ne.s32.totalorder %s215, %s216
      %p230 = scmp.eq.s32.totalorder %s25, 1
      %p231 = por %p229, %p230
      %p233 = scmp.ne.s32.totalorder %s216, %s232
      %p234 = scmp.eq.s32.totalorder %s25, 0
      %p235 = por %p233, %p234
      %p236 = scmp.le.s32.totalorder 1, %s19
      %p237 = scmp.lt.s32.totalorder %s19, 3
      %p238 = pnand %p236, %p237
      %p239 = pneg %p238
      // Predicated region
      $region9: #{tpu_custom_call.1} parent=5 // pred_check
        _
      $region10: #{tpu_custom_call.1} parent=5 // pred_check_branch
        %241 = sbr.rel (%p238) target = $region12
      $region11: #{tpu_custom_call.1} parent=5 // pred_region
        %s242 = ssub.s32 %s19, 1
        // Predicated region
        $region13: #{tpu_custom_call.1} parent=11 // pred_check
          %p243 = pneg %p118
        $region14: #{tpu_custom_call.1} parent=11 // pred_check_branch
          %245 = sbr.rel (%p243) target = $region16
        $region15: #{tpu_custom_call.1} parent=11 // pred_region
          _
        $region16: #{tpu_custom_call.1} parent=11 // pred_fallthru
          _
        // Predicated region
        $region17: #{tpu_custom_call.1} parent=11 // pred_check
          %p246 = pneg %p139
        $region18: #{tpu_custom_call.1} parent=11 // pred_check_branch
          %248 = sbr.rel (%p246) target = $region20
        $region19: #{tpu_custom_call.1} parent=11 // pred_region
          %s250 = ssub.s32 256, 256
          %251 = vsyncadd [#allocation3], %s250
          %s252 = sshll.u32 [#allocation2], 4
          %s253 = int_to_ptr.vmem [resolvable:$true] %s252
          %258 = dma.hbm_to_vmem [thread:$0]  %s4, 256, %s253, [#allocation3], 128, 128, 8
        $region20: #{tpu_custom_call.1} parent=11 // pred_fallthru
          _
        // Predicated region
        $region21: #{tpu_custom_call.1} parent=11 // pred_check
          %p259 = pneg %p160
        $region22: #{tpu_custom_call.1} parent=11 // pred_check_branch
          %261 = sbr.rel (%p259) target = $region24
        $region23: #{tpu_custom_call.1} parent=11 // pred_region
          %s263 = ssub.s32 512, 512
          %264 = vsyncadd [#allocation6], %s263
          %s265 = sshll.u32 [#allocation5], 4
          %s266 = int_to_ptr.vmem [resolvable:$true] %s265
          %271 = dma.hbm_to_vmem [thread:$0]  %s5, 512, %s266, [#allocation6], 128, 128, 8
        $region24: #{tpu_custom_call.1} parent=11 // pred_fallthru
          _
        // Predicated region
        $region25: #{tpu_custom_call.1} parent=11 // pred_check
          %p272 = pneg %p181
        $region26: #{tpu_custom_call.1} parent=11 // pred_check_branch
          %274 = sbr.rel (%p272) target = $region28
        $region27: #{tpu_custom_call.1} parent=11 // pred_region
          _
        $region28: #{tpu_custom_call.1} parent=11 // pred_fallthru
          _
        // Predicated region
        $region29: #{tpu_custom_call.1} parent=11 // pred_check
          %p275 = pneg %p202
        $region30: #{tpu_custom_call.1} parent=11 // pred_check_branch
          %277 = sbr.rel (%p275) target = $region32
        $region31: #{tpu_custom_call.1} parent=11 // pred_region
          _
        $region32: #{tpu_custom_call.1} parent=11 // pred_fallthru
          _
      $region12: #{tpu_custom_call.1} parent=5 // pred_fallthru
        _
      %p278 = scmp.lt.s32.totalorder %s19, 2
      // Predicated region
      $region33: #{tpu_custom_call.1} parent=5 // pred_check
        %p279 = pneg %p278
      $region34: #{tpu_custom_call.1} parent=5 // pred_check_branch
        %281 = sbr.rel (%p279) target = $region36
      $region35: #{tpu_custom_call.1} parent=5 // pred_region
        // Predicated region
        $region37: #{tpu_custom_call.1} parent=35 // pred_check
          %p282 = pneg %p39
        $region38: #{tpu_custom_call.1} parent=35 // pred_check_branch
          %284 = sbr.rel (%p282) target = $region40
        $region39: #{tpu_custom_call.1} parent=35 // pred_region
          %s285 = smul.u32 4, %s19
          %p286 = scmp.lt.s32.totalorder %s285, 7
          %s287 = scalar_select %p286, %s285, 7
          %s288 = smul.addr %s287, 8
          %s289 = scalar_lea.vmem %s0, %s288
          %s290 = smul.u32 4, %s19
        $region40: #{tpu_custom_call.1} parent=35 // pred_fallthru
          _
        // Predicated region
        $region41: #{tpu_custom_call.1} parent=35 // pred_check
          %p291 = pneg %p65
        $region42: #{tpu_custom_call.1} parent=35 // pred_check_branch
          %293 = sbr.rel (%p291) target = $region44
        $region43: #{tpu_custom_call.1} parent=35 // pred_region
          %s294 = smul.u32 4, %s19
          %p295 = scmp.lt.s32.totalorder %s294, 7
          %s296 = scalar_select %p295, %s294, 7
          %s297 = smul.addr %s296, 8
          %s298 = scalar_lea.vmem %s1, %s297
          %s299 = smul.u32 4, %s19
        $region44: #{tpu_custom_call.1} parent=35 // pred_fallthru
          _
        // Predicated region
        $region45: #{tpu_custom_call.1} parent=35 // pred_check
          %p300 = pneg %p91
        $region46: #{tpu_custom_call.1} parent=35 // pred_check_branch
          %302 = sbr.rel (%p300) target = $region48
        $region47: #{tpu_custom_call.1} parent=35 // pred_region
          %s303 = smul.u32 4, %s19
          %p304 = scmp.lt.s32.totalorder %s303, 7
          %s305 = scalar_select %p304, %s303, 7
          %s306 = smul.addr %s305, 8
          %s307 = scalar_lea.vmem %s2, %s306
          %s308 = smul.u32 4, %s19
        $region48: #{tpu_custom_call.1} parent=35 // pred_fallthru
          _
      $region36: #{tpu_custom_call.1} parent=5 // pred_fallthru
        _
      %p309 = scmp.le.s32.totalorder 1, %s19
      %p310 = scmp.lt.s32.totalorder %s19, 3
      %p311 = pnand %p309, %p310
      %p312 = pneg %p311
      // Predicated region
      $region49: #{tpu_custom_call.1} parent=5 // pred_check
        _
      $region50: #{tpu_custom_call.1} parent=5 // pred_check_branch
        %314 = sbr.rel (%p311) target = $region52
      $region51: #{tpu_custom_call.1} parent=5 // pred_region
        %s315 = ssub.s32 %s19, 1
        // Predicated region
        $region53: #{tpu_custom_call.1} parent=51 // pred_check
          %p316 = pneg %p139
        $region54: #{tpu_custom_call.1} parent=51 // pred_check_branch
          %318 = sbr.rel (%p316) target = $region56
        $region55: #{tpu_custom_call.1} parent=51 // pred_region
          %319 = dma.done [#allocation3], 256
        $region56: #{tpu_custom_call.1} parent=51 // pred_fallthru
          _
        // Predicated region
        $region57: #{tpu_custom_call.1} parent=51 // pred_check
          %p320 = pneg %p160
        $region58: #{tpu_custom_call.1} parent=51 // pred_check_branch
          %322 = sbr.rel (%p320) target = $region60
        $region59: #{tpu_custom_call.1} parent=51 // pred_region
          %323 = dma.done [#allocation6], 512
        $region60: #{tpu_custom_call.1} parent=51 // pred_fallthru
          _
        %s324 = smul.u32 4, %s24
        %p325 = scmp.lt.s32.totalorder %s324, 7
        %s326 = scalar_select %p325, %s324, 7
        %s327 = smul.addr %s326, 8
        %s328 = scalar_lea.vmem %s0, %s327
        %p329 = pneg %p45
        %p330 = pneg %p42
        %s331 = smul.u32 4, %s24
        %p332 = scmp.lt.s32.totalorder %s331, 7
        %s333 = scalar_select %p332, %s331, 7
        %s334 = smul.addr %s333, 8
        %s335 = scalar_lea.vmem %s1, %s334
        %p336 = pneg %p71
        %p337 = pneg %p68
        %s338 = smul.u32 4, %s24
        %p339 = scmp.lt.s32.totalorder %s338, 7
        %s340 = scalar_select %p339, %s338, 7
        %s341 = smul.addr %s340, 8
        %s342 = scalar_lea.vmem %s2, %s341
        %p343 = pneg %p97
        %p344 = pneg %p94
        %p345 = pneg %p118
        %p346 = pneg %p115
        %p347 = pneg %p139
        %p348 = pneg %p136
        %p349 = pneg %p160
        %p350 = pneg %p157
        %p351 = pneg %p181
        %p352 = pneg %p178
        %p353 = pneg %p202
        %p354 = pneg %p199
        %p355 = pneg %p228
        %p356 = pneg %p225
        %s357 = sand.u32 %s215, 1
        %s358 = scalar_lea.sflag [#allocation4], %s357
        %s359 = sand.u32 %s215, 1
        %s360 = smul.addr %s359, 32
        %s361 = scalar_lea.vmem [#allocation7], %s360
        %s362 = smul.u32 4, %s24
        %p363 = scmp.lt.s32.totalorder %s362, 7
        %s364 = scalar_select %p363, %s362, 7
        %s365 = smul.addr %s364, 8
        %s366 = scalar_lea.vmem %s0, %s365
        %s367 = smul.u32 4, %s24
        %s368 = smul.u32 4, %s24
        %p369 = scmp.lt.s32.totalorder %s368, 7
        %s370 = scalar_select %p369, %s368, 7
        %s371 = smul.addr %s370, 8
        %s372 = scalar_lea.vmem %s1, %s371
        %s373 = smul.u32 4, %s24
        %s374 = smul.u32 4, %s24
        %p375 = scmp.lt.s32.totalorder %s374, 7
        %s376 = scalar_select %p375, %s374, 7
        %s377 = smul.addr %s376, 8
        %s378 = scalar_lea.vmem %s2, %s377
        %s379 = smul.u32 4, %s24
        %s380 = smul.u32 4, %s24
        %v381 = vld [vmem:[%s366] sm:$0xff]
        %v382 = vld [vmem:[%s366 + $0x8] sm:$0xff]
        %v383 = vld [vmem:[%s366 + $0x10] sm:$0xff]
        %v384 = vld [vmem:[%s366 + $0x18] sm:$0xff]
        %v385 = vld [vmem:[%s3] ss:$0 sm:$0xff]
        %v386 = vld [vmem:[%s3 + $0x1] ss:$0 sm:$0xff]
        %vm387 = vcmask 130048
        %v388 = vsel %vm387, %v381, 0.0
        %389 = vadd.xlane.f32.xlu0 %v388
        %v390 = vpop.xlane.xlu0 %389
        %v391 = vsel %vm387, %v382, 0.0
        %392 = vadd.xlane.f32.xlu0 %v391
        %v393 = vpop.xlane.xlu0 %392
        %v394 = vsel %vm387, %v383, 0.0
        %395 = vadd.xlane.f32.xlu0 %v394
        %v396 = vpop.xlane.xlu0 %395
        %v397 = vsel %vm387, %v384, 0.0
        %398 = vadd.xlane.f32.xlu0 %v397
        %v399 = vpop.xlane.xlu0 %398
        %v400 = vrcp.pop 16.0
        %v401 = vmul.f32 %v390, %v400
        %v402 = vmul.f32 %v393, %v400
        %v403 = vmul.f32 %v396, %v400
        %v404 = vmul.f32 %v399, %v400
        %v405 = vsub.f32 %v381, %v401
        %v406 = vsub.f32 %v382, %v402
        %v407 = vsub.f32 %v383, %v403
        %v408 = vsub.f32 %v384, %v404
        %v409 = vmul.f32 %v405, %v405
        %v410 = vmul.f32 %v406, %v406
        %v411 = vmul.f32 %v407, %v407
        %v412 = vmul.f32 %v408, %v408
        %v413 = vsel %vm387, %v409, 0.0
        %414 = vadd.xlane.f32.xlu0 %v413
        %v415 = vpop.xlane.xlu0 %414
        %v416 = vsel %vm387, %v410, 0.0
        %417 = vadd.xlane.f32.xlu0 %v416
        %v418 = vpop.xlane.xlu0 %417
        %v419 = vsel %vm387, %v411, 0.0
        %420 = vadd.xlane.f32.xlu0 %v419
        %v421 = vpop.xlane.xlu0 %420
        %v422 = vsel %vm387, %v412, 0.0
        %423 = vadd.xlane.f32.xlu0 %v422
        %v424 = vpop.xlane.xlu0 %423
        %v425 = vmul.f32 %v415, %v400
        %v426 = vmul.f32 %v418, %v400
        %v427 = vmul.f32 %v421, %v400
        %v428 = vmul.f32 %v424, %v400
        %v429 = vadd.f32 %v425, 1e-05
        %v430 = vadd.f32 %v426, 1e-05
        %v431 = vadd.f32 %v427, 1e-05
        %v432 = vadd.f32 %v428, 1e-05
        %v433 = vrsqrt.pop %v429
        %v434 = vrsqrt.pop %v430
        %v435 = vrsqrt.pop %v431
        %v436 = vrsqrt.pop %v432
        %v437 = vmul.f32 %v405, %v433
        %v438 = vmul.f32 %v406, %v434
        %v439 = vmul.f32 %v407, %v435
        %v440 = vmul.f32 %v408, %v436
        %v441 = vmul.f32 %v437, %v385
        %v442 = vmul.f32 %v438, %v385
        %v443 = vmul.f32 %v439, %v385
        %v444 = vmul.f32 %v440, %v385
        %v445 = vadd.f32 %v441, %v386
        %v446 = vadd.f32 %v442, %v386
        %v447 = vadd.f32 %v443, %v386
        %v448 = vadd.f32 %v444, %v386
        %v449 = vld [vmem:[#allocation2] sm:$0xff]
        %v450 = vld [vmem:[#allocation2 + $0x8] sm:$0xff]
        %v451 = vld [vmem:[%s3 + $0x2] ss:$0 sm:$0xff]
        %v453 = vsel %vm387, %v445, 0
        %v456 = vsel %vm387, %v446, 0
        %v459 = vsel %vm387, %v447, 0
        %v462 = vsel %vm387, %v448, 0
        %464 = vmatprep.subr.mxu0 0.0
        %465 = vmatpush1.msra.mxu0 0.0
        %466 = vmatprep.subr.mxu0 0.0
        %467 = vmatpush1.msra.mxu0 0.0
        %468 = vmatprep.subr.mxu0 0.0
        %469 = vmatpush1.msra.mxu0 0.0
        %470 = vmatprep.subr.mxu0 0.0
        %471 = vmatpush1.msra.mxu0 0.0
        %472 = vmatprep.subr.mxu0 0.0
        %473 = vmatpush1.msra.mxu0 0.0
        %474 = vmatprep.subr.mxu0 0.0
        %475 = vmatpush1.msra.mxu0 0.0
        %476 = vmatprep.subr.mxu0 0.0
        %477 = vmatpush1.msra.mxu0 0.0
        %478 = vmatprep.subr.mxu0 0.0
        %479 = vmatpush1.msra.mxu0 0.0
        %480 = vmatprep.subr.mxu0 0.0
        %481 = vmatpush1.msra.mxu0 0.0
        %482 = vmatprep.subr.mxu0 0.0
        %483 = vmatpush1.msra.mxu0 0.0
        %484 = vmatprep.subr.mxu0 0.0
        %485 = vmatpush1.msra.mxu0 0.0
        %486 = vmatprep.subr.mxu0 0.0
        %487 = vmatpush1.msra.mxu0 0.0
        %488 = vmatprep.subr.mxu0 0.0
        %489 = vmatpush1.msra.mxu0 0.0
        %490 = vmatprep.subr.mxu0 0.0
        %491 = vmatpush1.msra.mxu0 0.0
        %492 = vmatprep.subr.mxu0 0.0
        %493 = vmatpush1.msra.mxu0 %v450
        %494 = vmatprep.subr.mxu0 0.0
        %495 = vmatpush1.msra.mxu0 %v449
        %496 = vmatprep.subr.mxu0 0.0
        %497 = vmatpush2.msra.mxu0 0.0
        %498 = vmatprep.subr.mxu0 0.0
        %499 = vmatpush2.msra.mxu0 0.0
        %500 = vmatprep.subr.mxu0 0.0
        %501 = vmatpush2.msra.mxu0 0.0
        %502 = vmatprep.subr.mxu0 0.0
        %503 = vmatpush2.msra.mxu0 0.0
        %504 = vmatprep.subr.mxu0 0.0
        %505 = vmatpush2.msra.mxu0 0.0
        %506 = vmatprep.subr.mxu0 0.0
        %507 = vmatpush2.msra.mxu0 0.0
        %508 = vmatprep.subr.mxu0 0.0
        %509 = vmatpush2.msra.mxu0 0.0
        %510 = vmatprep.subr.mxu0 0.0
        %511 = vmatpush2.msra.mxu0 0.0
        %512 = vmatprep.subr.mxu0 0.0
        %513 = vmatpush2.msra.mxu0 0.0
        %514 = vmatprep.subr.mxu0 0.0
        %515 = vmatpush2.msra.mxu0 0.0
        %516 = vmatprep.subr.mxu0 0.0
        %517 = vmatpush2.msra.mxu0 0.0
        %518 = vmatprep.subr.mxu0 0.0
        %519 = vmatpush2.msra.mxu0 0.0
        %520 = vmatprep.subr.mxu0 0.0
        %521 = vmatpush2.msra.mxu0 0.0
        %522 = vmatprep.subr.mxu0 0.0
        %523 = vmatpush2.msra.mxu0 0.0
        %524 = vmatprep.subr.mxu0 0.0
        %525 = vmatpush2.msra.mxu0 0.0
        %526 = vmatprep.subr.mxu0 0.0
        %527 = vmatpush2.msra.mxu0 0.0
        %528 = vmatprep.mubr.f32.mxu0 0.0
        %529 = vmatmul.mubr.f32.gmra.mxu0 %v453
        %v530 = vpop.f32.mrf.mxu0
        %v531 = vadd.f32 %v451, %v530
        %v532 = vpop.f32.mrf.mxu0
        %533 = vmatprep.mubr.f32.mxu0 0.0
        %534 = vmatmul.mubr.f32.gmra.mxu0 %v456
        %v535 = vpop.f32.mrf.mxu0
        %v536 = vadd.f32 %v451, %v535
        %v537 = vpop.f32.mrf.mxu0
        %538 = vmatprep.mubr.f32.mxu0 0.0
        %539 = vmatmul.mubr.f32.gmra.mxu0 %v459
        %v540 = vpop.f32.mrf.mxu0
        %v541 = vadd.f32 %v451, %v540
        %v542 = vpop.f32.mrf.mxu0
        %543 = vmatprep.mubr.f32.mxu0 0.0
        %544 = vmatmul.mubr.f32.gmra.mxu0 %v462
        %v545 = vpop.f32.mrf.mxu0
        %v546 = vadd.f32 %v451, %v545
        %v547 = vpop.f32.mrf.mxu0
        %548 = vdwg.mxu0
        %v549 = vmax.f32 %v531, 0.0
        %v550 = vmax.f32 %v536, 0.0
        %v551 = vmax.f32 %v541, 0.0
        %v552 = vmax.f32 %v546, 0.0
        %v553 = vld [vmem:[%s3 + $0x3] ss:$0 sm:$0xff]
        %v554 = vld [vmem:[%s3 + $0x4] ss:$0 sm:$0xff]
        %vm555 = vcmask 261120
        %v556 = vsel %vm555, %v549, 0.0
        %557 = vadd.xlane.f32.xlu0 %v556
        %v558 = vpop.xlane.xlu0 %557
        %v559 = vsel %vm555, %v550, 0.0
        %560 = vadd.xlane.f32.xlu0 %v559
        %v561 = vpop.xlane.xlu0 %560
        %v562 = vsel %vm555, %v551, 0.0
        %563 = vadd.xlane.f32.xlu0 %v562
        %v564 = vpop.xlane.xlu0 %563
        %v565 = vsel %vm555, %v552, 0.0
        %566 = vadd.xlane.f32.xlu0 %v565
        %v567 = vpop.xlane.xlu0 %566
        %v568 = vrcp.pop 32.0
        %v569 = vmul.f32 %v558, %v568
        %v570 = vmul.f32 %v561, %v568
        %v571 = vmul.f32 %v564, %v568
        %v572 = vmul.f32 %v567, %v568
        %v573 = vsub.f32 %v549, %v569
        %v574 = vsub.f32 %v550, %v570
        %v575 = vsub.f32 %v551, %v571
        %v576 = vsub.f32 %v552, %v572
        %v577 = vmul.f32 %v573, %v573
        %v578 = vmul.f32 %v574, %v574
        %v579 = vmul.f32 %v575, %v575
        %v580 = vmul.f32 %v576, %v576
        %v581 = vsel %vm555, %v577, 0.0
        %582 = vadd.xlane.f32.xlu0 %v581
        %v583 = vpop.xlane.xlu0 %582
        %v584 = vsel %vm555, %v578, 0.0
        %585 = vadd.xlane.f32.xlu0 %v584
        %v586 = vpop.xlane.xlu0 %585
        %v587 = vsel %vm555, %v579, 0.0
        %588 = vadd.xlane.f32.xlu0 %v587
        %v589 = vpop.xlane.xlu0 %588
        %v590 = vsel %vm555, %v580, 0.0
        %591 = vadd.xlane.f32.xlu0 %v590
        %v592 = vpop.xlane.xlu0 %591
        %v593 = vmul.f32 %v583, %v568
        %v594 = vmul.f32 %v586, %v568
        %v595 = vmul.f32 %v589, %v568
        %v596 = vmul.f32 %v592, %v568
        %v597 = vadd.f32 %v593, 1e-05
        %v598 = vadd.f32 %v594, 1e-05
        %v599 = vadd.f32 %v595, 1e-05
        %v600 = vadd.f32 %v596, 1e-05
        %v601 = vrsqrt.pop %v597
        %v602 = vrsqrt.pop %v598
        %v603 = vrsqrt.pop %v599
        %v604 = vrsqrt.pop %v600
        %v605 = vmul.f32 %v573, %v601
        %v606 = vmul.f32 %v574, %v602
        %v607 = vmul.f32 %v575, %v603
        %v608 = vmul.f32 %v576, %v604
        %v609 = vmul.f32 %v605, %v553
        %v610 = vmul.f32 %v606, %v553
        %v611 = vmul.f32 %v607, %v553
        %v612 = vmul.f32 %v608, %v553
        %v613 = vadd.f32 %v609, %v554
        %v614 = vadd.f32 %v610, %v554
        %v615 = vadd.f32 %v611, %v554
        %v616 = vadd.f32 %v612, %v554
        %v617 = vld [vmem:[#allocation5] sm:$0xff]
        %v618 = vld [vmem:[#allocation5 + $0x8] sm:$0xff]
        %v619 = vld [vmem:[#allocation5 + $0x10] sm:$0xff]
        %v620 = vld [vmem:[#allocation5 + $0x18] sm:$0xff]
        %v621 = vld [vmem:[%s3 + $0x5] ss:$0 sm:$0xff]
        %v623 = vsel %vm555, %v613, 0
        %v626 = vsel %vm555, %v614, 0
        %v629 = vsel %vm555, %v615, 0
        %v632 = vsel %vm555, %v616, 0
        %634 = vmatprep.subr.mxu0 0.0
        %635 = vmatpush1.msra.mxu0 0.0
        %636 = vmatprep.subr.mxu0 0.0
        %637 = vmatpush1.msra.mxu0 0.0
        %638 = vmatprep.subr.mxu0 0.0
        %639 = vmatpush1.msra.mxu0 0.0
        %640 = vmatprep.subr.mxu0 0.0
        %641 = vmatpush1.msra.mxu0 0.0
        %642 = vmatprep.subr.mxu0 0.0
        %643 = vmatpush1.msra.mxu0 0.0
        %644 = vmatprep.subr.mxu0 0.0
        %645 = vmatpush1.msra.mxu0 0.0
        %646 = vmatprep.subr.mxu0 0.0
        %647 = vmatpush1.msra.mxu0 0.0
        %648 = vmatprep.subr.mxu0 0.0
        %649 = vmatpush1.msra.mxu0 0.0
        %650 = vmatprep.subr.mxu0 0.0
        %651 = vmatpush1.msra.mxu0 0.0
        %652 = vmatprep.subr.mxu0 0.0
        %653 = vmatpush1.msra.mxu0 0.0
        %654 = vmatprep.subr.mxu0 0.0
        %655 = vmatpush1.msra.mxu0 0.0
        %656 = vmatprep.subr.mxu0 0.0
        %657 = vmatpush1.msra.mxu0 0.0
        %658 = vmatprep.subr.mxu0 0.0
        %659 = vmatpush1.msra.mxu0 %v620
        %660 = vmatprep.subr.mxu0 0.0
        %661 = vmatpush1.msra.mxu0 %v619
        %662 = vmatprep.subr.mxu0 0.0
        %663 = vmatpush1.msra.mxu0 %v618
        %664 = vmatprep.subr.mxu0 0.0
        %665 = vmatpush1.msra.mxu0 %v617
        %666 = vmatprep.subr.mxu0 0.0
        %667 = vmatpush2.msra.mxu0 0.0
        %668 = vmatprep.subr.mxu0 0.0
        %669 = vmatpush2.msra.mxu0 0.0
        %670 = vmatprep.subr.mxu0 0.0
        %671 = vmatpush2.msra.mxu0 0.0
        %672 = vmatprep.subr.mxu0 0.0
        %673 = vmatpush2.msra.mxu0 0.0
        %674 = vmatprep.subr.mxu0 0.0
        %675 = vmatpush2.msra.mxu0 0.0
        %676 = vmatprep.subr.mxu0 0.0
        %677 = vmatpush2.msra.mxu0 0.0
        %678 = vmatprep.subr.mxu0 0.0
        %679 = vmatpush2.msra.mxu0 0.0
        %680 = vmatprep.subr.mxu0 0.0
        %681 = vmatpush2.msra.mxu0 0.0
        %682 = vmatprep.subr.mxu0 0.0
        %683 = vmatpush2.msra.mxu0 0.0
        %684 = vmatprep.subr.mxu0 0.0
        %685 = vmatpush2.msra.mxu0 0.0
        %686 = vmatprep.subr.mxu0 0.0
        %687 = vmatpush2.msra.mxu0 0.0
        %688 = vmatprep.subr.mxu0 0.0
        %689 = vmatpush2.msra.mxu0 0.0
        %690 = vmatprep.subr.mxu0 0.0
        %691 = vmatpush2.msra.mxu0 0.0
        %692 = vmatprep.subr.mxu0 0.0
        %693 = vmatpush2.msra.mxu0 0.0
        %694 = vmatprep.subr.mxu0 0.0
        %695 = vmatpush2.msra.mxu0 0.0
        %696 = vmatprep.subr.mxu0 0.0
        %697 = vmatpush2.msra.mxu0 0.0
        %698 = vmatprep.mubr.f32.mxu0 0.0
        %699 = vmatmul.mubr.f32.gmra.mxu0 %v623
        %v700 = vpop.f32.mrf.mxu0
        %v701 = vadd.f32 %v621, %v700
        %v702 = vpop.f32.mrf.mxu0
        %703 = vmatprep.mubr.f32.mxu0 0.0
        %704 = vmatmul.mubr.f32.gmra.mxu0 %v626
        %v705 = vpop.f32.mrf.mxu0
        %v706 = vadd.f32 %v621, %v705
        %v707 = vpop.f32.mrf.mxu0
        %708 = vmatprep.mubr.f32.mxu0 0.0
        %709 = vmatmul.mubr.f32.gmra.mxu0 %v629
        %v710 = vpop.f32.mrf.mxu0
        %v711 = vadd.f32 %v621, %v710
        %v712 = vpop.f32.mrf.mxu0
        %713 = vmatprep.mubr.f32.mxu0 0.0
        %714 = vmatmul.mubr.f32.gmra.mxu0 %v632
        %v715 = vpop.f32.mrf.mxu0
        %v716 = vadd.f32 %v621, %v715
        %v717 = vpop.f32.mrf.mxu0
        %718 = vdwg.mxu0
        %v719 = vmax.f32 %v701, 0.0
        %v720 = vmax.f32 %v706, 0.0
        %v721 = vmax.f32 %v711, 0.0
        %v722 = vmax.f32 %v716, 0.0
        %v723 = vld [vmem:[%s3 + $0x6] ss:$0 sm:$0xff]
        %v724 = vld [vmem:[%s3 + $0x7] ss:$0 sm:$0xff]
        %v725 = vsel %vm555, %v719, 0.0
        %726 = vadd.xlane.f32.xlu0 %v725
        %v727 = vpop.xlane.xlu0 %726
        %v728 = vsel %vm555, %v720, 0.0
        %729 = vadd.xlane.f32.xlu0 %v728
        %v730 = vpop.xlane.xlu0 %729
        %v731 = vsel %vm555, %v721, 0.0
        %732 = vadd.xlane.f32.xlu0 %v731
        %v733 = vpop.xlane.xlu0 %732
        %v734 = vsel %vm555, %v722, 0.0
        %735 = vadd.xlane.f32.xlu0 %v734
        %v736 = vpop.xlane.xlu0 %735
        %v737 = vmul.f32 %v727, %v568
        %v738 = vmul.f32 %v730, %v568
        %v739 = vmul.f32 %v733, %v568
        %v740 = vmul.f32 %v736, %v568
        %v741 = vsub.f32 %v719, %v737
        %v742 = vsub.f32 %v720, %v738
        %v743 = vsub.f32 %v721, %v739
        %v744 = vsub.f32 %v722, %v740
        %v745 = vmul.f32 %v741, %v741
        %v746 = vmul.f32 %v742, %v742
        %v747 = vmul.f32 %v743, %v743
        %v748 = vmul.f32 %v744, %v744
        %v749 = vsel %vm555, %v745, 0.0
        %750 = vadd.xlane.f32.xlu0 %v749
        %v751 = vpop.xlane.xlu0 %750
        %v752 = vsel %vm555, %v746, 0.0
        %753 = vadd.xlane.f32.xlu0 %v752
        %v754 = vpop.xlane.xlu0 %753
        %v755 = vsel %vm555, %v747, 0.0
        %756 = vadd.xlane.f32.xlu0 %v755
        %v757 = vpop.xlane.xlu0 %756
        %v758 = vsel %vm555, %v748, 0.0
        %759 = vadd.xlane.f32.xlu0 %v758
        %v760 = vpop.xlane.xlu0 %759
        %v761 = vmul.f32 %v751, %v568
        %v762 = vmul.f32 %v754, %v568
        %v763 = vmul.f32 %v757, %v568
        %v764 = vmul.f32 %v760, %v568
        %v765 = vadd.f32 %v761, 1e-05
        %v766 = vadd.f32 %v762, 1e-05
        %v767 = vadd.f32 %v763, 1e-05
        %v768 = vadd.f32 %v764, 1e-05
        %v769 = vrsqrt.pop %v765
        %v770 = vrsqrt.pop %v766
        %v771 = vrsqrt.pop %v767
        %v772 = vrsqrt.pop %v768
        %v773 = vmul.f32 %v741, %v769
        %v774 = vmul.f32 %v742, %v770
        %v775 = vmul.f32 %v743, %v771
        %v776 = vmul.f32 %v744, %v772
        %v777 = vmul.f32 %v773, %v723
        %v778 = vmul.f32 %v774, %v723
        %v779 = vmul.f32 %v775, %v723
        %v780 = vmul.f32 %v776, %v723
        %v781 = vadd.f32 %v777, %v724
        %v782 = vadd.f32 %v778, %v724
        %v783 = vadd.f32 %v779, %v724
        %v784 = vadd.f32 %v780, %v724
        %v785 = vld [vmem:[%s372] sm:$0xff]
        %v786 = vld [vmem:[%s372 + $0x8] sm:$0xff]
        %v787 = vld [vmem:[%s372 + $0x10] sm:$0xff]
        %v788 = vld [vmem:[%s372 + $0x18] sm:$0xff]
        %v789 = vld [vmem:[%s378] sm:$0xff]
        %v790 = vld [vmem:[%s378 + $0x8] sm:$0xff]
        %v791 = vld [vmem:[%s378 + $0x10] sm:$0xff]
        %v792 = vld [vmem:[%s378 + $0x18] sm:$0xff]
        %794 = vset.pattern.permute.xlu0 0
        %795 = vperm.xlu0 %794, %v789
        %v796 = vpop.permute.xlu0 %795
        %799 = vset.pattern.permute.xlu0 0
        %800 = vperm.xlu0 %799, %v790
        %v801 = vpop.permute.xlu0 %800
        %804 = vset.pattern.permute.xlu0 0
        %805 = vperm.xlu0 %804, %v791
        %v806 = vpop.permute.xlu0 %805
        %809 = vset.pattern.permute.xlu0 0
        %810 = vperm.xlu0 %809, %v792
        %v811 = vpop.permute.xlu0 %810
        %v813 = vmul.f32 %v785, %v796
        %v814 = vmul.f32 %v786, %v801
        %v815 = vmul.f32 %v787, %v806
        %v816 = vmul.f32 %v788, %v811
        %v817 = vld [vmem:[%s6] sm:$0xff]
        %v818 = vld [vmem:[%s6 + $0x8] sm:$0xff]
        %v819 = vld [vmem:[%s6 + $0x10] sm:$0xff]
        %v820 = vld [vmem:[%s6 + $0x18] sm:$0xff]
        %v821 = vld [vmem:[%s6 + $0x20] sm:$0xff]
        %v822 = vld [vmem:[%s6 + $0x28] sm:$0xff]
        %v823 = vld [vmem:[%s6 + $0x30] sm:$0xff]
        %v824 = vld [vmem:[%s6 + $0x38] sm:$0xff]
        %v825 = vld [vmem:[%s6 + $0x40] sm:$0xff]
        %v826 = vld [vmem:[%s6 + $0x48] sm:$0xff]
        %v827 = vld [vmem:[%s6 + $0x50] sm:$0xff]
        %v828 = vld [vmem:[%s6 + $0x58] sm:$0xff]
        %s829 = scalar_lea.vmem %s3, 24
        %v830 = vld [vmem:[%s829] ss:$8 sm:$0x7]
        %v832 = vlaneseq
        %v833 = vshrl.u32 %v832, 7
        %v834 = vsub.s32 0, %v833
        %v835 = vrot.slane %v830, %v834
        %v836 = vlaneseq
        %v837 = vshrl.u32 %v836, 7
        %v838 = vsub.s32 1, %v837
        %v839 = vrot.slane %v830, %v838
        %v840 = vlaneseq
        %v841 = vshrl.u32 %v840, 7
        %v842 = vsub.s32 2, %v841
        %v843 = vrot.slane %v830, %v842
        %v848 = vsel %vm555, %v781, 0
        %v851 = vsel %vm555, %v782, 0
        %v854 = vsel %vm555, %v783, 0
        %v857 = vsel %vm555, %v784, 0
        %859 = vmatprep.subr.mxu0 0.0
        %860 = vmatpush1.msra.mxu0 0.0
        %861 = vmatprep.subr.mxu0 0.0
        %862 = vmatpush1.msra.mxu0 0.0
        %863 = vmatprep.subr.mxu0 0.0
        %864 = vmatpush1.msra.mxu0 0.0
        %865 = vmatprep.subr.mxu0 0.0
        %866 = vmatpush1.msra.mxu0 0.0
        %867 = vmatprep.subr.mxu0 0.0
        %868 = vmatpush1.msra.mxu0 0.0
        %869 = vmatprep.subr.mxu0 0.0
        %870 = vmatpush1.msra.mxu0 0.0
        %871 = vmatprep.subr.mxu0 0.0
        %872 = vmatpush1.msra.mxu0 0.0
        %873 = vmatprep.subr.mxu0 0.0
        %874 = vmatpush1.msra.mxu0 0.0
        %875 = vmatprep.subr.mxu0 0.0
        %876 = vmatpush1.msra.mxu0 0.0
        %877 = vmatprep.subr.mxu0 0.0
        %878 = vmatpush1.msra.mxu0 0.0
        %879 = vmatprep.subr.mxu0 0.0
        %880 = vmatpush1.msra.mxu0 0.0
        %881 = vmatprep.subr.mxu0 0.0
        %882 = vmatpush1.msra.mxu0 0.0
        %883 = vmatprep.subr.mxu0 %v827
        %884 = vmatpush1.msra.mxu0 %v826
        %885 = vmatprep.subr.mxu0 %v824
        %886 = vmatpush1.msra.mxu0 %v823
        %887 = vmatprep.subr.mxu0 %v821
        %888 = vmatpush1.msra.mxu0 %v820
        %889 = vmatprep.subr.mxu0 %v818
        %890 = vmatpush1.msra.mxu0 %v817
        %891 = vmatprep.subr.mxu0 0.0
        %892 = vmatpush2.msra.mxu0 0.0
        %893 = vmatprep.subr.mxu0 0.0
        %894 = vmatpush2.msra.mxu0 0.0
        %895 = vmatprep.subr.mxu0 0.0
        %896 = vmatpush2.msra.mxu0 0.0
        %897 = vmatprep.subr.mxu0 0.0
        %898 = vmatpush2.msra.mxu0 0.0
        %899 = vmatprep.subr.mxu0 0.0
        %900 = vmatpush2.msra.mxu0 0.0
        %901 = vmatprep.subr.mxu0 0.0
        %902 = vmatpush2.msra.mxu0 0.0
        %903 = vmatprep.subr.mxu0 0.0
        %904 = vmatpush2.msra.mxu0 0.0
        %905 = vmatprep.subr.mxu0 0.0
        %906 = vmatpush2.msra.mxu0 0.0
        %907 = vmatprep.subr.mxu0 0.0
        %908 = vmatpush2.msra.mxu0 0.0
        %909 = vmatprep.subr.mxu0 0.0
        %910 = vmatpush2.msra.mxu0 0.0
        %911 = vmatprep.subr.mxu0 0.0
        %912 = vmatpush2.msra.mxu0 0.0
        %913 = vmatprep.subr.mxu0 0.0
        %914 = vmatpush2.msra.mxu0 0.0
        %915 = vmatprep.subr.mxu0 0.0
        %916 = vmatpush2.msra.mxu0 0.0
        %917 = vmatprep.subr.mxu0 0.0
        %918 = vmatpush2.msra.mxu0 0.0
        %919 = vmatprep.subr.mxu0 0.0
        %920 = vmatpush2.msra.mxu0 0.0
        %921 = vmatprep.subr.mxu0 0.0
        %922 = vmatpush2.msra.mxu0 0.0
        %923 = vmatprep.mubr.f32.mxu0 0.0
        %924 = vmatmul.mubr.f32.gmra.mxu0 %v848
        %v925 = vpop.f32.mrf.mxu0
        %v926 = vadd.f32 %v835, %v925
        %v927 = vpop.f32.mrf.mxu0
        %v928 = vadd.f32 %v839, %v927
        %929 = vmatprep.mubr.f32.mxu0 0.0
        %930 = vmatmul.mubr.f32.gmra.mxu0 %v851
        %v931 = vpop.f32.mrf.mxu0
        %v932 = vadd.f32 %v835, %v931
        %v933 = vpop.f32.mrf.mxu0
        %v934 = vadd.f32 %v839, %v933
        %935 = vmatprep.mubr.f32.mxu0 0.0
        %936 = vmatmul.mubr.f32.gmra.mxu0 %v854
        %v937 = vpop.f32.mrf.mxu0
        %v938 = vadd.f32 %v835, %v937
        %v939 = vpop.f32.mrf.mxu0
        %v940 = vadd.f32 %v839, %v939
        %941 = vmatprep.mubr.f32.mxu0 0.0
        %942 = vmatmul.mubr.f32.gmra.mxu0 %v857
        %v943 = vpop.f32.mrf.mxu0
        %v944 = vadd.f32 %v835, %v943
        %v945 = vpop.f32.mrf.mxu0
        %v946 = vadd.f32 %v839, %v945
        %947 = vdwg.mxu0
        %948 = vmatprep.subr.mxu0 0.0
        %949 = vmatpush1.msra.mxu0 0.0
        %950 = vmatprep.subr.mxu0 0.0
        %951 = vmatpush1.msra.mxu0 0.0
        %952 = vmatprep.subr.mxu0 0.0
        %953 = vmatpush1.msra.mxu0 0.0
        %954 = vmatprep.subr.mxu0 0.0
        %955 = vmatpush1.msra.mxu0 0.0
        %956 = vmatprep.subr.mxu0 0.0
        %957 = vmatpush1.msra.mxu0 0.0
        %958 = vmatprep.subr.mxu0 0.0
        %959 = vmatpush1.msra.mxu0 0.0
        %960 = vmatprep.subr.mxu0 0.0
        %961 = vmatpush1.msra.mxu0 0.0
        %962 = vmatprep.subr.mxu0 0.0
        %963 = vmatpush1.msra.mxu0 0.0
        %964 = vmatprep.subr.mxu0 0.0
        %965 = vmatpush1.msra.mxu0 0.0
        %966 = vmatprep.subr.mxu0 0.0
        %967 = vmatpush1.msra.mxu0 0.0
        %968 = vmatprep.subr.mxu0 0.0
        %969 = vmatpush1.msra.mxu0 0.0
        %970 = vmatprep.subr.mxu0 0.0
        %971 = vmatpush1.msra.mxu0 0.0
        %972 = vmatprep.subr.mxu0 0.0
        %973 = vmatpush1.msra.mxu0 %v828
        %974 = vmatprep.subr.mxu0 0.0
        %975 = vmatpush1.msra.mxu0 %v825
        %976 = vmatprep.subr.mxu0 0.0
        %977 = vmatpush1.msra.mxu0 %v822
        %978 = vmatprep.subr.mxu0 0.0
        %979 = vmatpush1.msra.mxu0 %v819
        %980 = vmatprep.subr.mxu0 0.0
        %981 = vmatpush2.msra.mxu0 0.0
        %982 = vmatprep.subr.mxu0 0.0
        %983 = vmatpush2.msra.mxu0 0.0
        %984 = vmatprep.subr.mxu0 0.0
        %985 = vmatpush2.msra.mxu0 0.0
        %986 = vmatprep.subr.mxu0 0.0
        %987 = vmatpush2.msra.mxu0 0.0
        %988 = vmatprep.subr.mxu0 0.0
        %989 = vmatpush2.msra.mxu0 0.0
        %990 = vmatprep.subr.mxu0 0.0
        %991 = vmatpush2.msra.mxu0 0.0
        %992 = vmatprep.subr.mxu0 0.0
        %993 = vmatpush2.msra.mxu0 0.0
        %994 = vmatprep.subr.mxu0 0.0
        %995 = vmatpush2.msra.mxu0 0.0
        %996 = vmatprep.subr.mxu0 0.0
        %997 = vmatpush2.msra.mxu0 0.0
        %998 = vmatprep.subr.mxu0 0.0
        %999 = vmatpush2.msra.mxu0 0.0
        %1000 = vmatprep.subr.mxu0 0.0
        %1001 = vmatpush2.msra.mxu0 0.0
        %1002 = vmatprep.subr.mxu0 0.0
        %1003 = vmatpush2.msra.mxu0 0.0
        %1004 = vmatprep.subr.mxu0 0.0
        %1005 = vmatpush2.msra.mxu0 0.0
        %1006 = vmatprep.subr.mxu0 0.0
        %1007 = vmatpush2.msra.mxu0 0.0
        %1008 = vmatprep.subr.mxu0 0.0
        %1009 = vmatpush2.msra.mxu0 0.0
        %1010 = vmatprep.subr.mxu0 0.0
        %1011 = vmatpush2.msra.mxu0 0.0
        %1012 = vmatprep.mubr.f32.mxu0 0.0
        %1013 = vmatmul.mubr.f32.gmra.mxu0 %v848
        %v1014 = vpop.f32.mrf.mxu0
        %v1015 = vadd.f32 %v843, %v1014
        %v1016 = vpop.f32.mrf.mxu0
        %1017 = vmatprep.mubr.f32.mxu0 0.0
        %1018 = vmatmul.mubr.f32.gmra.mxu0 %v851
        %v1019 = vpop.f32.mrf.mxu0
        %v1020 = vadd.f32 %v843, %v1019
        %v1021 = vpop.f32.mrf.mxu0
        %1022 = vmatprep.mubr.f32.mxu0 0.0
        %1023 = vmatmul.mubr.f32.gmra.mxu0 %v854
        %v1024 = vpop.f32.mrf.mxu0
        %v1025 = vadd.f32 %v843, %v1024
        %v1026 = vpop.f32.mrf.mxu0
        %1027 = vmatprep.mubr.f32.mxu0 0.0
        %1028 = vmatmul.mubr.f32.gmra.mxu0 %v857
        %v1029 = vpop.f32.mrf.mxu0
        %v1030 = vadd.f32 %v843, %v1029
        %v1031 = vpop.f32.mrf.mxu0
        %1032 = vdwg.mxu0
        %v1033 = vld [vmem:[%s7] sm:$0xff]
        %v1034 = vld [vmem:[%s7 + $0x8] sm:$0xff]
        %v1035 = vld [vmem:[%s7 + $0x10] sm:$0xff]
        %v1036 = vld [vmem:[%s7 + $0x18] sm:$0xff]
        %v1037 = vld [vmem:[%s7 + $0x20] sm:$0xff]
        %v1038 = vld [vmem:[%s7 + $0x28] sm:$0xff]
        %v1039 = vld [vmem:[%s7 + $0x30] sm:$0xff]
        %v1040 = vld [vmem:[%s7 + $0x38] sm:$0xff]
        %v1041 = vld [vmem:[%s7 + $0x40] sm:$0xff]
        %v1042 = vld [vmem:[%s7 + $0x48] sm:$0xff]
        %v1043 = vld [vmem:[%s7 + $0x50] sm:$0xff]
        %v1044 = vld [vmem:[%s7 + $0x58] sm:$0xff]
        %s1045 = scalar_lea.vmem %s3, 25
        %v1046 = vld [vmem:[%s1045] ss:$8 sm:$0x7]
        %v1048 = vlaneseq
        %v1049 = vshrl.u32 %v1048, 7
        %v1050 = vsub.s32 0, %v1049
        %v1051 = vrot.slane %v1046, %v1050
        %v1052 = vlaneseq
        %v1053 = vshrl.u32 %v1052, 7
        %v1054 = vsub.s32 1, %v1053
        %v1055 = vrot.slane %v1046, %v1054
        %v1056 = vlaneseq
        %v1057 = vshrl.u32 %v1056, 7
        %v1058 = vsub.s32 2, %v1057
        %v1059 = vrot.slane %v1046, %v1058
        %v1064 = vsel %vm555, %v813, 0
        %v1067 = vsel %vm555, %v814, 0
        %v1070 = vsel %vm555, %v815, 0
        %v1073 = vsel %vm555, %v816, 0
        %1075 = vmatprep.subr.mxu0 0.0
        %1076 = vmatpush1.msra.mxu0 0.0
        %1077 = vmatprep.subr.mxu0 0.0
        %1078 = vmatpush1.msra.mxu0 0.0
        %1079 = vmatprep.subr.mxu0 0.0
        %1080 = vmatpush1.msra.mxu0 0.0
        %1081 = vmatprep.subr.mxu0 0.0
        %1082 = vmatpush1.msra.mxu0 0.0
        %1083 = vmatprep.subr.mxu0 0.0
        %1084 = vmatpush1.msra.mxu0 0.0
        %1085 = vmatprep.subr.mxu0 0.0
        %1086 = vmatpush1.msra.mxu0 0.0
        %1087 = vmatprep.subr.mxu0 0.0
        %1088 = vmatpush1.msra.mxu0 0.0
        %1089 = vmatprep.subr.mxu0 0.0
        %1090 = vmatpush1.msra.mxu0 0.0
        %1091 = vmatprep.subr.mxu0 0.0
        %1092 = vmatpush1.msra.mxu0 0.0
        %1093 = vmatprep.subr.mxu0 0.0
        %1094 = vmatpush1.msra.mxu0 0.0
        %1095 = vmatprep.subr.mxu0 0.0
        %1096 = vmatpush1.msra.mxu0 0.0
        %1097 = vmatprep.subr.mxu0 0.0
        %1098 = vmatpush1.msra.mxu0 0.0
        %1099 = vmatprep.subr.mxu0 %v1043
        %1100 = vmatpush1.msra.mxu0 %v1042
        %1101 = vmatprep.subr.mxu0 %v1040
        %1102 = vmatpush1.msra.mxu0 %v1039
        %1103 = vmatprep.subr.mxu0 %v1037
        %1104 = vmatpush1.msra.mxu0 %v1036
        %1105 = vmatprep.subr.mxu0 %v1034
        %1106 = vmatpush1.msra.mxu0 %v1033
        %1107 = vmatprep.subr.mxu0 0.0
        %1108 = vmatpush2.msra.mxu0 0.0
        %1109 = vmatprep.subr.mxu0 0.0
        %1110 = vmatpush2.msra.mxu0 0.0
        %1111 = vmatprep.subr.mxu0 0.0
        %1112 = vmatpush2.msra.mxu0 0.0
        %1113 = vmatprep.subr.mxu0 0.0
        %1114 = vmatpush2.msra.mxu0 0.0
        %1115 = vmatprep.subr.mxu0 0.0
        %1116 = vmatpush2.msra.mxu0 0.0
        %1117 = vmatprep.subr.mxu0 0.0
        %1118 = vmatpush2.msra.mxu0 0.0
        %1119 = vmatprep.subr.mxu0 0.0
        %1120 = vmatpush2.msra.mxu0 0.0
        %1121 = vmatprep.subr.mxu0 0.0
        %1122 = vmatpush2.msra.mxu0 0.0
        %1123 = vmatprep.subr.mxu0 0.0
        %1124 = vmatpush2.msra.mxu0 0.0
        %1125 = vmatprep.subr.mxu0 0.0
        %1126 = vmatpush2.msra.mxu0 0.0
        %1127 = vmatprep.subr.mxu0 0.0
        %1128 = vmatpush2.msra.mxu0 0.0
        %1129 = vmatprep.subr.mxu0 0.0
        %1130 = vmatpush2.msra.mxu0 0.0
        %1131 = vmatprep.subr.mxu0 0.0
        %1132 = vmatpush2.msra.mxu0 0.0
        %1133 = vmatprep.subr.mxu0 0.0
        %1134 = vmatpush2.msra.mxu0 0.0
        %1135 = vmatprep.subr.mxu0 0.0
        %1136 = vmatpush2.msra.mxu0 0.0
        %1137 = vmatprep.subr.mxu0 0.0
        %1138 = vmatpush2.msra.mxu0 0.0
        %1139 = vmatprep.mubr.f32.mxu0 0.0
        %1140 = vmatmul.mubr.f32.gmra.mxu0 %v1064
        %v1141 = vpop.f32.mrf.mxu0
        %v1142 = vadd.f32 %v1051, %v1141
        %v1143 = vpop.f32.mrf.mxu0
        %v1144 = vadd.f32 %v1055, %v1143
        %1145 = vmatprep.mubr.f32.mxu0 0.0
        %1146 = vmatmul.mubr.f32.gmra.mxu0 %v1067
        %v1147 = vpop.f32.mrf.mxu0
        %v1148 = vadd.f32 %v1051, %v1147
        %v1149 = vpop.f32.mrf.mxu0
        %v1150 = vadd.f32 %v1055, %v1149
        %1151 = vmatprep.mubr.f32.mxu0 0.0
        %1152 = vmatmul.mubr.f32.gmra.mxu0 %v1070
        %v1153 = vpop.f32.mrf.mxu0
        %v1154 = vadd.f32 %v1051, %v1153
        %v1155 = vpop.f32.mrf.mxu0
        %v1156 = vadd.f32 %v1055, %v1155
        %1157 = vmatprep.mubr.f32.mxu0 0.0
        %1158 = vmatmul.mubr.f32.gmra.mxu0 %v1073
        %v1159 = vpop.f32.mrf.mxu0
        %v1160 = vadd.f32 %v1051, %v1159
        %v1161 = vpop.f32.mrf.mxu0
        %v1162 = vadd.f32 %v1055, %v1161
        %1163 = vdwg.mxu0
        %1164 = vmatprep.subr.mxu0 0.0
        %1165 = vmatpush1.msra.mxu0 0.0
        %1166 = vmatprep.subr.mxu0 0.0
        %1167 = vmatpush1.msra.mxu0 0.0
        %1168 = vmatprep.subr.mxu0 0.0
        %1169 = vmatpush1.msra.mxu0 0.0
        %1170 = vmatprep.subr.mxu0 0.0
        %1171 = vmatpush1.msra.mxu0 0.0
        %1172 = vmatprep.subr.mxu0 0.0
        %1173 = vmatpush1.msra.mxu0 0.0
        %1174 = vmatprep.subr.mxu0 0.0
        %1175 = vmatpush1.msra.mxu0 0.0
        %1176 = vmatprep.subr.mxu0 0.0
        %1177 = vmatpush1.msra.mxu0 0.0
        %1178 = vmatprep.subr.mxu0 0.0
        %1179 = vmatpush1.msra.mxu0 0.0
        %1180 = vmatprep.subr.mxu0 0.0
        %1181 = vmatpush1.msra.mxu0 0.0
        %1182 = vmatprep.subr.mxu0 0.0
        %1183 = vmatpush1.msra.mxu0 0.0
        %1184 = vmatprep.subr.mxu0 0.0
        %1185 = vmatpush1.msra.mxu0 0.0
        %1186 = vmatprep.subr.mxu0 0.0
        %1187 = vmatpush1.msra.mxu0 0.0
        %1188 = vmatprep.subr.mxu0 0.0
        %1189 = vmatpush1.msra.mxu0 %v1044
        %1190 = vmatprep.subr.mxu0 0.0
        %1191 = vmatpush1.msra.mxu0 %v1041
        %1192 = vmatprep.subr.mxu0 0.0
        %1193 = vmatpush1.msra.mxu0 %v1038
        %1194 = vmatprep.subr.mxu0 0.0
        %1195 = vmatpush1.msra.mxu0 %v1035
        %1196 = vmatprep.subr.mxu0 0.0
        %1197 = vmatpush2.msra.mxu0 0.0
        %1198 = vmatprep.subr.mxu0 0.0
        %1199 = vmatpush2.msra.mxu0 0.0
        %1200 = vmatprep.subr.mxu0 0.0
        %1201 = vmatpush2.msra.mxu0 0.0
        %1202 = vmatprep.subr.mxu0 0.0
        %1203 = vmatpush2.msra.mxu0 0.0
        %1204 = vmatprep.subr.mxu0 0.0
        %1205 = vmatpush2.msra.mxu0 0.0
        %1206 = vmatprep.subr.mxu0 0.0
        %1207 = vmatpush2.msra.mxu0 0.0
        %1208 = vmatprep.subr.mxu0 0.0
        %1209 = vmatpush2.msra.mxu0 0.0
        %1210 = vmatprep.subr.mxu0 0.0
        %1211 = vmatpush2.msra.mxu0 0.0
        %1212 = vmatprep.subr.mxu0 0.0
        %1213 = vmatpush2.msra.mxu0 0.0
        %1214 = vmatprep.subr.mxu0 0.0
        %1215 = vmatpush2.msra.mxu0 0.0
        %1216 = vmatprep.subr.mxu0 0.0
        %1217 = vmatpush2.msra.mxu0 0.0
        %1218 = vmatprep.subr.mxu0 0.0
        %1219 = vmatpush2.msra.mxu0 0.0
        %1220 = vmatprep.subr.mxu0 0.0
        %1221 = vmatpush2.msra.mxu0 0.0
        %1222 = vmatprep.subr.mxu0 0.0
        %1223 = vmatpush2.msra.mxu0 0.0
        %1224 = vmatprep.subr.mxu0 0.0
        %1225 = vmatpush2.msra.mxu0 0.0
        %1226 = vmatprep.subr.mxu0 0.0
        %1227 = vmatpush2.msra.mxu0 0.0
        %1228 = vmatprep.mubr.f32.mxu0 0.0
        %1229 = vmatmul.mubr.f32.gmra.mxu0 %v1064
        %v1230 = vpop.f32.mrf.mxu0
        %v1231 = vadd.f32 %v1059, %v1230
        %v1232 = vpop.f32.mrf.mxu0
        %1233 = vmatprep.mubr.f32.mxu0 0.0
        %1234 = vmatmul.mubr.f32.gmra.mxu0 %v1067
        %v1235 = vpop.f32.mrf.mxu0
        %v1236 = vadd.f32 %v1059, %v1235
        %v1237 = vpop.f32.mrf.mxu0
        %1238 = vmatprep.mubr.f32.mxu0 0.0
        %1239 = vmatmul.mubr.f32.gmra.mxu0 %v1070
        %v1240 = vpop.f32.mrf.mxu0
        %v1241 = vadd.f32 %v1059, %v1240
        %v1242 = vpop.f32.mrf.mxu0
        %1243 = vmatprep.mubr.f32.mxu0 0.0
        %1244 = vmatmul.mubr.f32.gmra.mxu0 %v1073
        %v1245 = vpop.f32.mrf.mxu0
        %v1246 = vadd.f32 %v1059, %v1245
        %v1247 = vpop.f32.mrf.mxu0
        %1248 = vdwg.mxu0
        %v1249 = vadd.f32 %v926, %v1142
        %v1250 = vadd.f32 %v932, %v1148
        %v1251 = vadd.f32 %v938, %v1154
        %v1252 = vadd.f32 %v944, %v1160
        %v1253 = vxor.u32 %v1249, 2147483648
        %v1254 = vxor.u32 %v1250, 2147483648
        %v1255 = vxor.u32 %v1251, 2147483648
        %v1256 = vxor.u32 %v1252, 2147483648
        %v1257 = vmul.f32 %v1253, 1.442695
        %v1258 = vpow.pop %v1257
        %v1259 = vmul.f32 %v1254, 1.442695
        %v1260 = vpow.pop %v1259
        %v1261 = vmul.f32 %v1255, 1.442695
        %v1262 = vpow.pop %v1261
        %v1263 = vmul.f32 %v1256, 1.442695
        %v1264 = vpow.pop %v1263
        %v1265 = vadd.f32 %v1258, 1.0
        %v1266 = vadd.f32 %v1260, 1.0
        %v1267 = vadd.f32 %v1262, 1.0
        %v1268 = vadd.f32 %v1264, 1.0
        %v1269 = vrcp.pop %v1265
        %v1270 = vmul.f32 1.0, %v1269
        %v1271 = vrcp.pop %v1266
        %v1272 = vmul.f32 1.0, %v1271
        %v1273 = vrcp.pop %v1267
        %v1274 = vmul.f32 1.0, %v1273
        %v1275 = vrcp.pop %v1268
        %v1276 = vmul.f32 1.0, %v1275
        %v1277 = vadd.f32 %v928, %v1144
        %v1278 = vadd.f32 %v934, %v1150
        %v1279 = vadd.f32 %v940, %v1156
        %v1280 = vadd.f32 %v946, %v1162
        %v1281 = vxor.u32 %v1277, 2147483648
        %v1282 = vxor.u32 %v1278, 2147483648
        %v1283 = vxor.u32 %v1279, 2147483648
        %v1284 = vxor.u32 %v1280, 2147483648
        %v1285 = vmul.f32 %v1281, 1.442695
        %v1286 = vpow.pop %v1285
        %v1287 = vmul.f32 %v1282, 1.442695
        %v1288 = vpow.pop %v1287
        %v1289 = vmul.f32 %v1283, 1.442695
        %v1290 = vpow.pop %v1289
        %v1291 = vmul.f32 %v1284, 1.442695
        %v1292 = vpow.pop %v1291
        %v1293 = vadd.f32 %v1286, 1.0
        %v1294 = vadd.f32 %v1288, 1.0
        %v1295 = vadd.f32 %v1290, 1.0
        %v1296 = vadd.f32 %v1292, 1.0
        %v1297 = vrcp.pop %v1293
        %v1298 = vmul.f32 1.0, %v1297
        %v1299 = vrcp.pop %v1294
        %v1300 = vmul.f32 1.0, %v1299
        %v1301 = vrcp.pop %v1295
        %v1302 = vmul.f32 1.0, %v1301
        %v1303 = vrcp.pop %v1296
        %v1304 = vmul.f32 1.0, %v1303
        %v1305 = vmul.f32 %v1270, %v1231
        %v1306 = vmul.f32 %v1272, %v1236
        %v1307 = vmul.f32 %v1274, %v1241
        %v1308 = vmul.f32 %v1276, %v1246
        %v1309 = vadd.f32 %v1015, %v1305
        %v1310 = vadd.f32 %v1020, %v1306
        %v1311 = vadd.f32 %v1025, %v1307
        %v1312 = vadd.f32 %v1030, %v1308
        %v1313 = vtanh.pop %v1309
        %v1314 = vtanh.pop %v1310
        %v1315 = vtanh.pop %v1311
        %v1316 = vtanh.pop %v1312
        %v1317 = vsub.f32 1.0, %v1298
        %v1318 = vsub.f32 1.0, %v1300
        %v1319 = vsub.f32 1.0, %v1302
        %v1320 = vsub.f32 1.0, %v1304
        %v1321 = vmul.f32 %v1317, %v1313
        %v1322 = vmul.f32 %v1318, %v1314
        %v1323 = vmul.f32 %v1319, %v1315
        %v1324 = vmul.f32 %v1320, %v1316
        %v1325 = vmul.f32 %v1298, %v813
        %v1326 = vmul.f32 %v1300, %v814
        %v1327 = vmul.f32 %v1302, %v815
        %v1328 = vmul.f32 %v1304, %v816
        %v1329 = vadd.f32 %v1321, %v1325
        %v1330 = vadd.f32 %v1322, %v1326
        %v1331 = vadd.f32 %v1323, %v1327
        %v1332 = vadd.f32 %v1324, %v1328
        %1333 = vst.msk [vmem:[%s361] sm:$0xff] %vm555, %v1329
        %1334 = vst.msk [vmem:[%s361 + $0x8] sm:$0xff] %vm555, %v1330
        %1335 = vst.msk [vmem:[%s361 + $0x10] sm:$0xff] %vm555, %v1331
        %1336 = vst.msk [vmem:[%s361 + $0x18] sm:$0xff] %vm555, %v1332
        %v1337 = vld [vmem:[%s3 + $0x1a] ss:$0 sm:$0xff]
        %v1338 = vld [vmem:[%s3 + $0x1b] ss:$0 sm:$0xff]
        %v1339 = vsel %vm555, %v1329, 0.0
        %1340 = vadd.xlane.f32.xlu0 %v1339
        %v1341 = vpop.xlane.xlu0 %1340
        %v1342 = vsel %vm555, %v1330, 0.0
        %1343 = vadd.xlane.f32.xlu0 %v1342
        %v1344 = vpop.xlane.xlu0 %1343
        %v1345 = vsel %vm555, %v1331, 0.0
        %1346 = vadd.xlane.f32.xlu0 %v1345
        %v1347 = vpop.xlane.xlu0 %1346
        %v1348 = vsel %vm555, %v1332, 0.0
        %1349 = vadd.xlane.f32.xlu0 %v1348
        %v1350 = vpop.xlane.xlu0 %1349
        %v1351 = vmul.f32 %v1341, %v568
        %v1352 = vmul.f32 %v1344, %v568
        %v1353 = vmul.f32 %v1347, %v568
        %v1354 = vmul.f32 %v1350, %v568
        %v1355 = vsub.f32 %v1329, %v1351
        %v1356 = vsub.f32 %v1330, %v1352
        %v1357 = vsub.f32 %v1331, %v1353
        %v1358 = vsub.f32 %v1332, %v1354
        %v1359 = vmul.f32 %v1355, %v1355
        %v1360 = vmul.f32 %v1356, %v1356
        %v1361 = vmul.f32 %v1357, %v1357
        %v1362 = vmul.f32 %v1358, %v1358
        %v1363 = vsel %vm555, %v1359, 0.0
        %1364 = vadd.xlane.f32.xlu0 %v1363
        %v1365 = vpop.xlane.xlu0 %1364
        %v1366 = vsel %vm555, %v1360, 0.0
        %1367 = vadd.xlane.f32.xlu0 %v1366
        %v1368 = vpop.xlane.xlu0 %1367
        %v1369 = vsel %vm555, %v1361, 0.0
        %1370 = vadd.xlane.f32.xlu0 %v1369
        %v1371 = vpop.xlane.xlu0 %1370
        %v1372 = vsel %vm555, %v1362, 0.0
        %1373 = vadd.xlane.f32.xlu0 %v1372
        %v1374 = vpop.xlane.xlu0 %1373
        %v1375 = vmul.f32 %v1365, %v568
        %v1376 = vmul.f32 %v1368, %v568
        %v1377 = vmul.f32 %v1371, %v568
        %v1378 = vmul.f32 %v1374, %v568
        %v1379 = vadd.f32 %v1375, 1e-05
        %v1380 = vadd.f32 %v1376, 1e-05
        %v1381 = vadd.f32 %v1377, 1e-05
        %v1382 = vadd.f32 %v1378, 1e-05
        %v1383 = vrsqrt.pop %v1379
        %v1384 = vrsqrt.pop %v1380
        %v1385 = vrsqrt.pop %v1381
        %v1386 = vrsqrt.pop %v1382
        %v1387 = vmul.f32 %v1355, %v1383
        %v1388 = vmul.f32 %v1356, %v1384
        %v1389 = vmul.f32 %v1357, %v1385
        %v1390 = vmul.f32 %v1358, %v1386
        %v1391 = vmul.f32 %v1387, %v1337
        %v1392 = vmul.f32 %v1388, %v1337
        %v1393 = vmul.f32 %v1389, %v1337
        %v1394 = vmul.f32 %v1390, %v1337
        %v1395 = vadd.f32 %v1391, %v1338
        %v1396 = vadd.f32 %v1392, %v1338
        %v1397 = vadd.f32 %v1393, %v1338
        %v1398 = vadd.f32 %v1394, %v1338
        %v1399 = vld [vmem:[%s3 + $0x1c] ss:$0 sm:$0xff]
        %v1400 = vmul.f32 %v1395, %v1399
        %v1401 = vmul.f32 %v1396, %v1399
        %v1402 = vmul.f32 %v1397, %v1399
        %v1403 = vmul.f32 %v1398, %v1399
        %v1404 = vsel %vm555, %v1400, 0.0
        %1405 = vadd.xlane.f32.xlu0 %v1404
        %v1406 = vpop.xlane.xlu0 %1405
        %v1407 = vsel %vm555, %v1401, 0.0
        %1408 = vadd.xlane.f32.xlu0 %v1407
        %v1409 = vpop.xlane.xlu0 %1408
        %v1410 = vsel %vm555, %v1402, 0.0
        %1411 = vadd.xlane.f32.xlu0 %v1410
        %v1412 = vpop.xlane.xlu0 %1411
        %v1413 = vsel %vm555, %v1403, 0.0
        %1414 = vadd.xlane.f32.xlu0 %v1413
        %v1415 = vpop.xlane.xlu0 %1414
        %v1416 = vld [vmem:[%s3 + $0x1d] ss:$0 sm:$0xff]
        %v1417 = vadd.f32 %v1406, %v1416
        %v1418 = vadd.f32 %v1409, %v1416
        %v1419 = vadd.f32 %v1412, %v1416
        %v1420 = vadd.f32 %v1415, %v1416
        %1425 = vrot.lane.b32.xlu0 %v1417, 32
        %v1426 = vpop.permute.xlu0 %1425
        %1427 = vrot.lane.b32.xlu0 %v1418, 32
        %v1428 = vpop.permute.xlu0 %1427
        %1429 = vrot.lane.b32.xlu0 %v1419, 32
        %v1430 = vpop.permute.xlu0 %1429
        %1431 = vrot.lane.b32.xlu0 %v1420, 32
        %v1432 = vpop.permute.xlu0 %1431
        %vm1437 = vcmask 1047808
        %1438 = vst.msk [vmem:[%s361] sm:$0xff] %vm1437, %v1426
        %1439 = vst.msk [vmem:[%s361 + $0x8] sm:$0xff] %vm1437, %v1428
        %1440 = vst.msk [vmem:[%s361 + $0x10] sm:$0xff] %vm1437, %v1430
        %1441 = vst.msk [vmem:[%s361 + $0x18] sm:$0xff] %vm1437, %v1432
        %s1442 = sand.u32 %s215, 1
        %s1443 = scalar_lea.sflag [#allocation4], %s1442
        %s1444 = sand.u32 %s215, 1
        %s1445 = smul.addr %s1444, 32
        %s1446 = scalar_lea.vmem [#allocation7], %s1445
        // Predicated region
        $region61: #{tpu_custom_call.1} parent=51 // pred_check
          %p1447 = pneg %p225
        $region62: #{tpu_custom_call.1} parent=51 // pred_check_branch
          %1449 = sbr.rel (%p1447) target = $region64
        $region63: #{tpu_custom_call.1} parent=51 // pred_region
          %s1450 = smul.u32 4, %s24
          %s1452 = ssub.s32 512, 512
          %1453 = vsyncadd %s1443, %s1452
          %s1454 = smul.addr %s1450, 128
          %s1455 = scalar_lea.hbm %s8, %s1454
          %s1456 = sshll.u32 %s1446, 4
          %s1457 = int_to_ptr.vmem [resolvable:$true] %s1456
          %1462 = dma.vmem_to_hbm [thread:$0]  %s1457, 512, %s1455, %s1443, 128, 128, 8
        $region64: #{tpu_custom_call.1} parent=51 // pred_fallthru
          _
      $region52: #{tpu_custom_call.1} parent=5 // pred_fallthru
        _
      %p1463 = scmp.le.s32.totalorder 2, %s19
      // Predicated region
      $region65: #{tpu_custom_call.1} parent=5 // pred_check
        %p1464 = pneg %p1463
      $region66: #{tpu_custom_call.1} parent=5 // pred_check_branch
        %1466 = sbr.rel (%p1464) target = $region68
      $region67: #{tpu_custom_call.1} parent=5 // pred_region
        %s1467 = ssub.s32 %s19, 2
        // Predicated region
        $region69: #{tpu_custom_call.1} parent=67 // pred_check
          %p1468 = pneg %p231
        $region70: #{tpu_custom_call.1} parent=67 // pred_check_branch
          %1470 = sbr.rel (%p1468) target = $region72
        $region71: #{tpu_custom_call.1} parent=67 // pred_region
          %s1471 = sand.u32 %s216, 1
          %s1472 = scalar_lea.sflag [#allocation4], %s1471
          %s1473 = sand.u32 %s216, 1
          %s1474 = smul.addr %s1473, 32
          %s1475 = scalar_lea.vmem [#allocation7], %s1474
          %1476 = dma.done %s1472, 512
        $region72: #{tpu_custom_call.1} parent=67 // pred_fallthru
          _
      $region68: #{tpu_custom_call.1} parent=5 // pred_fallthru
        _
    $region6: #{tpu_custom_call.1} parent=1 // loop_footer
      %s23 = sadd.s32 1, %s19
    $region7: #{tpu_custom_call.1} parent=1 // loop_footer_branch
      %18 = sbr.rel target = $region3
    $region8: #{tpu_custom_call.1} parent=1 // loop_exit
      _
    %1477 = vsyncpa [#allocation3], 1
    %s1478 = scalar_lea.sflag [#allocation3], 1
    %1479 = vsyncpa %s1478, 1
    %1480 = vsyncpa [#allocation6], 1
    %1481 = vsyncpa [#allocation4], 1
    %s1482 = scalar_lea.sflag [#allocation4], 1
    %1483 = vsyncpa %s1482, 1

</llo_original>
